<compile_context>
chip_gen: v7x
topology: tpu7x:2x2x1
jax: 0.10.0
libtpu: 0.0.40
codegen_flags: <defaults>
</compile_context>

<pallas_src>
import functools

import numpy as np
import jax
import jax.numpy as jnp
from jax.experimental import pallas as pl
from jax.experimental.pallas import tpu as pltpu


def eca_kernel_size(channels, gamma=2, b=1):
    # Same formula as the PyTorch module.
    t = int(abs((np.log2(channels) + b) / gamma))
    return t if t % 2 else t + 1


def _round_up(x, m):
    return ((x + m - 1) // m) * m


def _vmem_budget_bytes():
    """Generation-aware scoped-VMEM budget (trace-time query, safe fallback)."""
    cap = 64 << 20
    try:
        cap = int(getattr(pltpu.get_tpu_info(), "vmem_capacity_bytes", cap))
    except Exception:
        pass
    # Never ask for more than half the physical VMEM, and cap at 32 MiB so a
    # tiling tuned on v5e/v6e (128 MiB) is still safe on v7x (64 MiB).
    return max(16 << 20, min(cap // 2, 32 << 20))


def _conv1d_same(mean, w, k_size):
    """Cross-correlation with zero 'same' padding over the channel axis,
    matching torch.nn.Conv1d(1, 1, k, padding=(k-1)//2, bias=False).
    Works both in-kernel (w = SMEM ref) and in plain JAX (w = array)."""
    bsz = mean.shape[0]
    pad = (k_size - 1) // 2
    y = jnp.zeros_like(mean)
    for j in range(k_size):
        sh = j - pad
        if sh == 0:
            shifted = mean
        elif sh > 0:
            shifted = jnp.concatenate(
                [mean[:, sh:], jnp.zeros((bsz, sh), mean.dtype)], axis=1)
        else:
            shifted = jnp.concatenate(
                [jnp.zeros((bsz, -sh), mean.dtype), mean[:, :sh]], axis=1)
        y = y + w[j] * shifted
    return y


# ------------------------------ kernels ------------------------------------
def _eca_fused_kernel(x_ref, w_ref, o_ref, *, n_points, c_pad, k_size, pack):
    # Fast path: whole packed tensor is VMEM resident.
    s = jnp.sum(x_ref[...], axis=1)                     # (B, lanes) channel sums
    tot = s[:, 0:c_pad]
    for q in range(1, pack):                            # fold packed point groups
        tot = tot + s[:, q * c_pad:(q + 1) * c_pad]
    mean = tot * (1.0 / n_points)                       # divide by the TRUE N
    g = jax.nn.sigmoid(_conv1d_same(mean, w_ref, k_size))
    if pack > 1:                                        # replicate over groups
        g = jnp.concatenate([g] * pack, axis=-1)
    o_ref[...] = x_ref[...] * g[:, None, :]


def _eca_partial_sum_kernel(x_ref, psum_ref):
    # grid = (split, steps): leading axis "parallel" (per-core partial sums on
    # v7x), inner axis "arbitrary" (sequential reduction into resident block).
    @pl.when(pl.program_id(1) == 0)
    def _init():
        psum_ref[...] = jnp.zeros_like(psum_ref)
    psum_ref[...] += jnp.sum(x_ref[...], axis=1)[None]   # (1, B, lanes)


def _eca_scale_kernel(x_ref, g_ref, o_ref):
    # Broadcast-multiply each point's features by its batch element's gate.
    o_ref[...] = x_ref[...] * g_ref[...][:, None, :]


# ------------------------------ wrapper -------------------------------------
def eca_forward(x, conv_w, *, _force_streaming=False, _max_tile_bytes=None):
    """ECALayer forward.  x: (B, N, C) point features, conv_w: (k,) weights."""
    orig_dtype = x.dtype
    B, N, C = x.shape
    k_size = int(conv_w.shape[0])
    xf = x.astype(jnp.float32)
    w = conv_w.astype(jnp.float32)

    budget = _vmem_budget_bytes()

    # --- lane packing / channel padding: always present lane-dense blocks ---
    if C % 128 == 0:
        pack, c_pad = 1, C
    elif C < 128 and 128 % C == 0:
        pack, c_pad = 128 // C, C
    else:
        pack, c_pad = 1, _round_up(C, 128)            # pad C instead of giving up

    if c_pad != C:
        xf = jnp.pad(xf, ((0, 0), (0, 0), (0, c_pad - C)))
    n_rows = pl.cdiv(N, pack)
    n_pack = n_rows * pack
    if n_pack != N:                                   # zero rows: sums unaffected
        xf = jnp.pad(xf, ((0, 0), (0, n_pack - N), (0, 0)))
    lanes = c_pad * pack
    xp = xf.reshape(B, n_rows, lanes)
    x_bytes = B * n_rows * lanes * 4

    # ---------------- fast path: single fused VMEM-resident kernel ----------
    fast_limit = min(budget // 4, 8 << 20)
    if (not _force_streaming) and x_bytes <= fast_limit:
        out = pl.pallas_call(
            functools.partial(_eca_fused_kernel, n_points=N, c_pad=c_pad,
                              k_size=k_size, pack=pack),
            in_specs=[pl.BlockSpec(memory_space=pltpu.MemorySpace.VMEM),
                      pl.BlockSpec(memory_space=pltpu.MemorySpace.SMEM)],
            out_specs=pl.BlockSpec(memory_space=pltpu.MemorySpace.VMEM),
            out_shape=jax.ShapeDtypeStruct((B, n_rows, lanes), jnp.float32),
            compiler_params=pltpu.CompilerParams(vmem_limit_bytes=budget),
        )(xp, w)
        out = out.reshape(B, n_pack, c_pad)[:, :N, :C]
        return out.astype(orig_dtype)

    # ---------------- streaming two-pass path -------------------------------
    row_bytes = B * lanes * 4
    max_tile_bytes = (_max_tile_bytes if _max_tile_bytes is not None
                      else min(budget // 8, 4 << 20))   # ~16 MiB working set
    tn = max(8, (max_tile_bytes // row_bytes) // 8 * 8)
    tn = min(tn, _round_up(n_rows, 8))

    split = 2 if pl.cdiv(n_rows, tn) >= 2 else 1        # v7x: 2 TCs on pass 1
    n_rows_pad = _round_up(n_rows, tn * split)          # pad rows, never fall
    if n_rows_pad != n_rows:                            # back to one huge block
        xp = jnp.pad(xp, ((0, 0), (0, n_rows_pad - n_rows), (0, 0)))
    n_tiles = n_rows_pad // tn
    steps = n_tiles // split

    def _sum_x_map(c, i):
        return (0, c * steps + i, 0)

    def _sum_out_map(c, i):
        return (c, 0, 0)

    # Pass 1: per-core partial channel sums (reduction over row tiles).
    psum = pl.pallas_call(
        _eca_partial_sum_kernel,
        grid=(split, steps),
        in_specs=[pl.BlockSpec((B, tn, lanes), _sum_x_map)],
        out_specs=pl.BlockSpec((1, B, lanes), _sum_out_map),
        out_shape=jax.ShapeDtypeStruct((split, B, lanes), jnp.float32),
        compiler_params=pltpu.CompilerParams(
            dimension_semantics=("parallel", "arbitrary"),
            vmem_limit_bytes=budget),
    )(xp)

    # Tiny (B, C) gate finalize: combine partials, mean, conv1d, sigmoid.
    # Plain JAX — negligible work, off the streaming critical path.
    sums = jnp.sum(psum, axis=0)                          # (B, lanes)
    total = jnp.sum(sums.reshape(B, pack, c_pad), axis=1)  # fold packed groups
    mean = total * (1.0 / N)                              # divide by TRUE N once
    gate = jax.nn.sigmoid(_conv1d_same(mean, w, k_size))  # (B, c_pad)
    gate = jnp.tile(gate, (1, pack))                      # (B, lanes)

    def _row_map(i):
        return (0, i, 0)

    def _gate_map(i):
        return (0, 0)

    # Pass 2: tiled broadcast multiply (parallel -> megacore split on v7x).
    out = pl.pallas_call(
        _eca_scale_kernel,
        grid=(n_tiles,),
        in_specs=[pl.BlockSpec((B, tn, lanes), _row_map),
                  pl.BlockSpec((B, lanes), _gate_map)],
        out_specs=pl.BlockSpec((B, tn, lanes), _row_map),
        out_shape=jax.ShapeDtypeStruct((B, n_rows_pad, lanes), jnp.float32),
        compiler_params=pltpu.CompilerParams(
            dimension_semantics=("parallel",),
            vmem_limit_bytes=budget),
    )(xp, gate)

    out = out.reshape(B, n_rows_pad * pack, c_pad)[:, :N, :C]
    return out.astype(orig_dtype)


# ------------------------------ reference & test ----------------------------
def _eca_reference(x, conv_w):
    mean = jnp.mean(x.astype(jnp.float32), axis=1)        # (B, C)
    k = conv_w.shape[0]
    pad = (k - 1) // 2
    mp = jnp.pad(mean, ((0, 0), (pad, pad)))
    y = sum(conv_w[j] * mp[:, j:j + mean.shape[1]] for j in range(k))
    return x * jax.nn.sigmoid(y)[:, None, :].astype(x.dtype)


if __name__ == "__main__":
    B, N, C = 2, 4096, 64
    key = jax.random.PRNGKey(0)
    kx, kb, kw = jax.random.split(key, 3)
    # Per-channel offsets make the pooled mean (and hence the gate) O(1) so the
    # correctness check is discriminative.
    x = (jax.random.normal(kx, (B, N, C), jnp.float32)
         + jax.random.normal(kb, (1, 1, C), jnp.float32))
    k_size = eca_kernel_size(C)                           # -> 3 for C = 64
    conv_w = jax.random.normal(kw, (k_size,), jnp.float32) / np.sqrt(k_size)

    ref = jax.block_until_ready(_eca_reference(x, conv_w))

    # 1) Fast path (whole tensor VMEM-resident, single fused kernel).
    out_fast = jax.block_until_ready(jax.jit(eca_forward)(x, conv_w))
    assert out_fast.shape == (B, N, C) and out_fast.dtype == jnp.float32
    np.testing.assert_allclose(np.asarray(out_fast), np.asarray(ref),
                               rtol=1e-3, atol=1e-3)

    # 2) Streaming two-pass path with small tiles: exercises the core-split
    #    reduction, resident accumulator, tiled scale pass and row padding.
    stream_fn = jax.jit(functools.partial(eca_forward,
                                          _force_streaming=True,
                                          _max_tile_bytes=256 * 1024))
    out_stream = jax.block_until_ready(stream_fn(x, conv_w))
    np.testing.assert_allclose(np.asarray(out_stream), np.asarray(ref),
                               rtol=1e-3, atol=1e-3)

    # 3) Odd N (not divisible by the lane-pack factor or the tile) exercises
    #    the zero-padding path with the mean still divided by the true N.
    x2 = x[:, :1000, :]
    ref2 = jax.block_until_ready(_eca_reference(x2, conv_w))
    out2 = jax.block_until_ready(stream_fn(x2, conv_w))
    np.testing.assert_allclose(np.asarray(out2), np.asarray(ref2),
                               rtol=1e-3, atol=1e-3)

    print("KERNEL_OK")
</pallas_src>

<mosaic_0001>
module attributes {stable_mosaic.version = 11 : i64} {
  func.func @_eca_fused_kernel(%arg0: memref<2x2048x128xf32, #tpu.memory_space<vmem>>, %arg1: memref<3xf32, #tpu.memory_space<smem>>, %arg2: memref<2x2048x128xf32, #tpu.memory_space<vmem>>) attributes {dimension_semantics = [], scalar_prefetch = 0 : i64, scratch_operands = 0 : i64, tpu.core_type = #tpu.core_type<tc>} {
    %c0 = arith.constant 0 : index
    %c0_0 = arith.constant 0 : index
    %c0_1 = arith.constant 0 : index
    %0 = vector.load %arg0[%c0, %c0_0, %c0_1] : memref<2x2048x128xf32, #tpu.memory_space<vmem>>, vector<2x2048x128xf32>
    %cst = arith.constant dense<0.000000e+00> : vector<2x128xf32>
    %1 = vector.multi_reduction <add>, %0, %cst [1] : vector<2x2048x128xf32> to vector<2x128xf32>
    %2 = vector.extract_strided_slice %1 {offsets = [0, 0], sizes = [2, 64], strides = [1, 1]} : vector<2x128xf32> to vector<2x64xf32>
    %3 = vector.extract_strided_slice %1 {offsets = [0, 64], sizes = [2, 64], strides = [1, 1]} : vector<2x128xf32> to vector<2x64xf32>
    %4 = arith.addf %2, %3 : vector<2x64xf32>
    %cst_2 = arith.constant 2.44140625E-4 : f32
    %5 = vector.broadcast %cst_2 : f32 to vector<2x64xf32>
    %6 = arith.mulf %4, %5 : vector<2x64xf32>
    %cst_3 = arith.constant 0.000000e+00 : f32
    %7 = vector.broadcast %cst_3 : f32 to vector<2x64xf32>
    %cst_4 = arith.constant 0.000000e+00 : f32
    %8 = vector.broadcast %cst_4 : f32 to vector<2x1xf32>
    %9 = vector.extract_strided_slice %6 {offsets = [0, 0], sizes = [2, 63], strides = [1, 1]} : vector<2x64xf32> to vector<2x63xf32>
    %10 = tpu.concatenate %8, %9 in 1 : vector<2x1xf32>, vector<2x63xf32> -> vector<2x64xf32>
    %c0_5 = arith.constant 0 : index
    %11 = memref.load %arg1[%c0_5] : memref<3xf32, #tpu.memory_space<smem>>
    %12 = vector.broadcast %11 : f32 to vector<2x64xf32>
    %13 = arith.mulf %12, %10 : vector<2x64xf32>
    %14 = arith.addf %7, %13 : vector<2x64xf32>
    %c1 = arith.constant 1 : index
    %15 = memref.load %arg1[%c1] : memref<3xf32, #tpu.memory_space<smem>>
    %16 = vector.broadcast %15 : f32 to vector<2x64xf32>
    %17 = arith.mulf %16, %6 : vector<2x64xf32>
    %18 = arith.addf %14, %17 : vector<2x64xf32>
    %19 = vector.extract_strided_slice %6 {offsets = [0, 1], sizes = [2, 63], strides = [1, 1]} : vector<2x64xf32> to vector<2x63xf32>
    %cst_6 = arith.constant 0.000000e+00 : f32
    %20 = vector.broadcast %cst_6 : f32 to vector<2x1xf32>
    %21 = tpu.concatenate %19, %20 in 1 : vector<2x63xf32>, vector<2x1xf32> -> vector<2x64xf32>
    %c2 = arith.constant 2 : index
    %22 = memref.load %arg1[%c2] : memref<3xf32, #tpu.memory_space<smem>>
    %23 = vector.broadcast %22 : f32 to vector<2x64xf32>
    %24 = arith.mulf %23, %21 : vector<2x64xf32>
    %25 = arith.addf %18, %24 : vector<2x64xf32>
    %26 = arith.negf %25 : vector<2x64xf32>
    %27 = math.exp %26 : vector<2x64xf32>
    %cst_7 = arith.constant 1.000000e+00 : f32
    %28 = vector.broadcast %cst_7 : f32 to vector<2x64xf32>
    %29 = arith.addf %28, %27 : vector<2x64xf32>
    %30 = arith.divf %28, %29 : vector<2x64xf32>
    %31 = tpu.concatenate %30, %30 in 1 : vector<2x64xf32>, vector<2x64xf32> -> vector<2x128xf32>
    %c0_8 = arith.constant 0 : index
    %c0_9 = arith.constant 0 : index
    %c0_10 = arith.constant 0 : index
    %32 = vector.load %arg0[%c0_8, %c0_9, %c0_10] : memref<2x2048x128xf32, #tpu.memory_space<vmem>>, vector<2x2048x128xf32>
    %33 = vector.shape_cast %31 : vector<2x128xf32> to vector<2x1x128xf32>
    %34 = vector.broadcast %33 : vector<2x1x128xf32> to vector<2x2048x128xf32>
    %35 = arith.mulf %32, %34 : vector<2x2048x128xf32>
    %c0_11 = arith.constant 0 : index
    %c0_12 = arith.constant 0 : index
    %c0_13 = arith.constant 0 : index
    %36 = vector.load %arg2[%c0_11, %c0_12, %c0_13] : memref<2x2048x128xf32, #tpu.memory_space<vmem>>, vector<2x2048x128xf32>
    tpu.vector_store %arg2[%c0_11, %c0_12, %c0_13], %35 {strides = array<i32>} : memref<2x2048x128xf32, #tpu.memory_space<vmem>>, vector<2x2048x128xf32>,
    return
  }
}

</mosaic_0001>

<llo_original>
// kernel: eca_forward.1
$region0: #{eca_forward.1}
  #allocation0 [shape = 'u32[]', space=smem, size = 0x4, offset = 0x4, fixed_abs, tag = 'smem constant byte address 0x4 - core index']
  #allocation1 [shape = 'u32[144,128]{1,0:T(1,128)}', space=vmem, size = 0x12000, scoped, tag = 'internal scratch']
  %s0 = inlined_call_operand.vmem [shape: f32[2,2048,128], index: 0, kind: input, shape index: {}]
  %s1 = inlined_call_operand.vmem [shape: f32[3], index: 1, kind: input, shape index: {}]
  %s2 = inlined_call_operand.vmem [shape: f32[2,2048,128], index: 2, kind: output, shape index: {}]
  %s3 = sld [smem:[#allocation0]]
  $region22: #{eca_forward.1} parent=0
    _
  %s5 = ssub.s32 1, %s3
  %s6 = scalar_select 0, %s5, %s3
  $region1: #{eca_forward.1} parent=0
    #allocation2 [shape = 'u8[512]{0}', space=smem, size = 0x200, scoped, tag = 'input window, operand 1, single buffered']
    #allocation3 [shape = 's32[1]{0}', space=sflag, size = 0x4, scoped, tag = 'scoped memory for eca_forward.1']
    %7 = vsyncpa [#allocation3], 0
    // Predicated region
    $region2: #{eca_forward.1} parent=1 // pred_check
      _
    $region3: #{eca_forward.1} parent=1 // pred_check_branch
      %9 = sbr.rel (0) target = $region5
    $region4: #{eca_forward.1} parent=1 // pred_region
      _
    $region5: #{eca_forward.1} parent=1 // pred_fallthru
      _
    // Predicated region
    $region6: #{eca_forward.1} parent=1 // pred_check
      _
    $region7: #{eca_forward.1} parent=1 // pred_check_branch
      %11 = sbr.rel (0) target = $region9
    $region8: #{eca_forward.1} parent=1 // pred_region
      %s13 = ssub.s32 16, 16
      %14 = vsyncadd [#allocation3], %s13
      %s16 = sshll.u32 %s1, 4
      %s17 = int_to_ptr.vmem [resolvable:$true] %s16
      %19 = dma.vmem_to_smem %s17, 16, [#allocation2], [#allocation3]
    $region9: #{eca_forward.1} parent=1 // pred_fallthru
      _
    // Predicated region
    $region10: #{eca_forward.1} parent=1 // pred_check
      _
    $region11: #{eca_forward.1} parent=1 // pred_check_branch
      %21 = sbr.rel (0) target = $region13
    $region12: #{eca_forward.1} parent=1 // pred_region
      %22 = dma.done [#allocation3], 16
    $region13: #{eca_forward.1} parent=1 // pred_fallthru
      _
    %23 = sfence
    %v24 = vld [vmem:[%s0] sm:$0xff]
    %v25 = vld [vmem:[%s0 + $0x8] sm:$0xff]
    %v26 = vld [vmem:[%s0 + $0x10] sm:$0xff]
    %v27 = vld [vmem:[%s0 + $0x18] sm:$0xff]
    %v28 = vld [vmem:[%s0 + $0x20] sm:$0xff]
    %v29 = vld [vmem:[%s0 + $0x28] sm:$0xff]
    %v30 = vld [vmem:[%s0 + $0x30] sm:$0xff]
    %v31 = vld [vmem:[%s0 + $0x38] sm:$0xff]
    %v32 = vld [vmem:[%s0 + $0x40] sm:$0xff]
    %v33 = vld [vmem:[%s0 + $0x48] sm:$0xff]
    %v34 = vld [vmem:[%s0 + $0x50] sm:$0xff]
    %v35 = vld [vmem:[%s0 + $0x58] sm:$0xff]
    %v36 = vld [vmem:[%s0 + $0x60] sm:$0xff]
    %v37 = vld [vmem:[%s0 + $0x68] sm:$0xff]
    %v38 = vld [vmem:[%s0 + $0x70] sm:$0xff]
    %v39 = vld [vmem:[%s0 + $0x78] sm:$0xff]
    %v40 = vld [vmem:[%s0 + $0x80] sm:$0xff]
    %v41 = vld [vmem:[%s0 + $0x88] sm:$0xff]
    %v42 = vld [vmem:[%s0 + $0x90] sm:$0xff]
    %v43 = vld [vmem:[%s0 + $0x98] sm:$0xff]
    %v44 = vld [vmem:[%s0 + $0xa0] sm:$0xff]
    %v45 = vld [vmem:[%s0 + $0xa8] sm:$0xff]
    %v46 = vld [vmem:[%s0 + $0xb0] sm:$0xff]
    %v47 = vld [vmem:[%s0 + $0xb8] sm:$0xff]
    %v48 = vld [vmem:[%s0 + $0xc0] sm:$0xff]
    %v49 = vld [vmem:[%s0 + $0xc8] sm:$0xff]
    %v50 = vld [vmem:[%s0 + $0xd0] sm:$0xff]
    %v51 = vld [vmem:[%s0 + $0xd8] sm:$0xff]
    %v52 = vld [vmem:[%s0 + $0xe0] sm:$0xff]
    %v53 = vld [vmem:[%s0 + $0xe8] sm:$0xff]
    %v54 = vld [vmem:[%s0 + $0xf0] sm:$0xff]
    %v55 = vld [vmem:[%s0 + $0xf8] sm:$0xff]
    %v56 = vld [vmem:[%s0 + $0x100] sm:$0xff]
    %v57 = vld [vmem:[%s0 + $0x108] sm:$0xff]
    %v58 = vld [vmem:[%s0 + $0x110] sm:$0xff]
    %v59 = vld [vmem:[%s0 + $0x118] sm:$0xff]
    %v60 = vld [vmem:[%s0 + $0x120] sm:$0xff]
    %v61 = vld [vmem:[%s0 + $0x128] sm:$0xff]
    %v62 = vld [vmem:[%s0 + $0x130] sm:$0xff]
    %v63 = vld [vmem:[%s0 + $0x138] sm:$0xff]
    %v64 = vld [vmem:[%s0 + $0x140] sm:$0xff]
    %v65 = vld [vmem:[%s0 + $0x148] sm:$0xff]
    %v66 = vld [vmem:[%s0 + $0x150] sm:$0xff]
    %v67 = vld [vmem:[%s0 + $0x158] sm:$0xff]
    %v68 = vld [vmem:[%s0 + $0x160] sm:$0xff]
    %v69 = vld [vmem:[%s0 + $0x168] sm:$0xff]
    %v70 = vld [vmem:[%s0 + $0x170] sm:$0xff]
    %v71 = vld [vmem:[%s0 + $0x178] sm:$0xff]
    %v72 = vld [vmem:[%s0 + $0x180] sm:$0xff]
    %v73 = vld [vmem:[%s0 + $0x188] sm:$0xff]
    %v74 = vld [vmem:[%s0 + $0x190] sm:$0xff]
    %v75 = vld [vmem:[%s0 + $0x198] sm:$0xff]
    %v76 = vld [vmem:[%s0 + $0x1a0] sm:$0xff]
    %v77 = vld [vmem:[%s0 + $0x1a8] sm:$0xff]
    %v78 = vld [vmem:[%s0 + $0x1b0] sm:$0xff]
    %v79 = vld [vmem:[%s0 + $0x1b8] sm:$0xff]
    %v80 = vld [vmem:[%s0 + $0x1c0] sm:$0xff]
    %v81 = vld [vmem:[%s0 + $0x1c8] sm:$0xff]
    %v82 = vld [vmem:[%s0 + $0x1d0] sm:$0xff]
    %v83 = vld [vmem:[%s0 + $0x1d8] sm:$0xff]
    %v84 = vld [vmem:[%s0 + $0x1e0] sm:$0xff]
    %v85 = vld [vmem:[%s0 + $0x1e8] sm:$0xff]
    %v86 = vld [vmem:[%s0 + $0x1f0] sm:$0xff]
    %v87 = vld [vmem:[%s0 + $0x1f8] sm:$0xff]
    %v88 = vld [vmem:[%s0 + $0x200] sm:$0xff]
    %v89 = vld [vmem:[%s0 + $0x208] sm:$0xff]
    %v90 = vld [vmem:[%s0 + $0x210] sm:$0xff]
    %v91 = vld [vmem:[%s0 + $0x218] sm:$0xff]
    %v92 = vld [vmem:[%s0 + $0x220] sm:$0xff]
    %v93 = vld [vmem:[%s0 + $0x228] sm:$0xff]
    %v94 = vld [vmem:[%s0 + $0x230] sm:$0xff]
    %v95 = vld [vmem:[%s0 + $0x238] sm:$0xff]
    %v96 = vld [vmem:[%s0 + $0x240] sm:$0xff]
    %v97 = vld [vmem:[%s0 + $0x248] sm:$0xff]
    %v98 = vld [vmem:[%s0 + $0x250] sm:$0xff]
    %v99 = vld [vmem:[%s0 + $0x258] sm:$0xff]
    %v100 = vld [vmem:[%s0 + $0x260] sm:$0xff]
    %v101 = vld [vmem:[%s0 + $0x268] sm:$0xff]
    %v102 = vld [vmem:[%s0 + $0x270] sm:$0xff]
    %v103 = vld [vmem:[%s0 + $0x278] sm:$0xff]
    %v104 = vld [vmem:[%s0 + $0x280] sm:$0xff]
    %v105 = vld [vmem:[%s0 + $0x288] sm:$0xff]
    %v106 = vld [vmem:[%s0 + $0x290] sm:$0xff]
    %v107 = vld [vmem:[%s0 + $0x298] sm:$0xff]
    %v108 = vld [vmem:[%s0 + $0x2a0] sm:$0xff]
    %v109 = vld [vmem:[%s0 + $0x2a8] sm:$0xff]
    %v110 = vld [vmem:[%s0 + $0x2b0] sm:$0xff]
    %v111 = vld [vmem:[%s0 + $0x2b8] sm:$0xff]
    %v112 = vld [vmem:[%s0 + $0x2c0] sm:$0xff]
    %v113 = vld [vmem:[%s0 + $0x2c8] sm:$0xff]
    %v114 = vld [vmem:[%s0 + $0x2d0] sm:$0xff]
    %v115 = vld [vmem:[%s0 + $0x2d8] sm:$0xff]
    %v116 = vld [vmem:[%s0 + $0x2e0] sm:$0xff]
    %v117 = vld [vmem:[%s0 + $0x2e8] sm:$0xff]
    %v118 = vld [vmem:[%s0 + $0x2f0] sm:$0xff]
    %v119 = vld [vmem:[%s0 + $0x2f8] sm:$0xff]
    %v120 = vld [vmem:[%s0 + $0x300] sm:$0xff]
    %v121 = vld [vmem:[%s0 + $0x308] sm:$0xff]
    %v122 = vld [vmem:[%s0 + $0x310] sm:$0xff]
    %v123 = vld [vmem:[%s0 + $0x318] sm:$0xff]
    %v124 = vld [vmem:[%s0 + $0x320] sm:$0xff]
    %v125 = vld [vmem:[%s0 + $0x328] sm:$0xff]
    %v126 = vld [vmem:[%s0 + $0x330] sm:$0xff]
    %v127 = vld [vmem:[%s0 + $0x338] sm:$0xff]
    %v128 = vld [vmem:[%s0 + $0x340] sm:$0xff]
    %v129 = vld [vmem:[%s0 + $0x348] sm:$0xff]
    %v130 = vld [vmem:[%s0 + $0x350] sm:$0xff]
    %v131 = vld [vmem:[%s0 + $0x358] sm:$0xff]
    %v132 = vld [vmem:[%s0 + $0x360] sm:$0xff]
    %v133 = vld [vmem:[%s0 + $0x368] sm:$0xff]
    %v134 = vld [vmem:[%s0 + $0x370] sm:$0xff]
    %v135 = vld [vmem:[%s0 + $0x378] sm:$0xff]
    %v136 = vld [vmem:[%s0 + $0x380] sm:$0xff]
    %v137 = vld [vmem:[%s0 + $0x388] sm:$0xff]
    %v138 = vld [vmem:[%s0 + $0x390] sm:$0xff]
    %v139 = vld [vmem:[%s0 + $0x398] sm:$0xff]
    %v140 = vld [vmem:[%s0 + $0x3a0] sm:$0xff]
    %v141 = vld [vmem:[%s0 + $0x3a8] sm:$0xff]
    %v142 = vld [vmem:[%s0 + $0x3b0] sm:$0xff]
    %v143 = vld [vmem:[%s0 + $0x3b8] sm:$0xff]
    %v144 = vld [vmem:[%s0 + $0x3c0] sm:$0xff]
    %v145 = vld [vmem:[%s0 + $0x3c8] sm:$0xff]
    %v146 = vld [vmem:[%s0 + $0x3d0] sm:$0xff]
    %v147 = vld [vmem:[%s0 + $0x3d8] sm:$0xff]
    %v148 = vld [vmem:[%s0 + $0x3e0] sm:$0xff]
    %v149 = vld [vmem:[%s0 + $0x3e8] sm:$0xff]
    %v150 = vld [vmem:[%s0 + $0x3f0] sm:$0xff]
    %v151 = vld [vmem:[%s0 + $0x3f8] sm:$0xff]
    %v152 = vld [vmem:[%s0 + $0x400] sm:$0xff]
    %v153 = vld [vmem:[%s0 + $0x408] sm:$0xff]
    %v154 = vld [vmem:[%s0 + $0x410] sm:$0xff]
    %v155 = vld [vmem:[%s0 + $0x418] sm:$0xff]
    %v156 = vld [vmem:[%s0 + $0x420] sm:$0xff]
    %v157 = vld [vmem:[%s0 + $0x428] sm:$0xff]
    %v158 = vld [vmem:[%s0 + $0x430] sm:$0xff]
    %v159 = vld [vmem:[%s0 + $0x438] sm:$0xff]
    %v160 = vld [vmem:[%s0 + $0x440] sm:$0xff]
    %v161 = vld [vmem:[%s0 + $0x448] sm:$0xff]
    %v162 = vld [vmem:[%s0 + $0x450] sm:$0xff]
    %v163 = vld [vmem:[%s0 + $0x458] sm:$0xff]
    %v164 = vld [vmem:[%s0 + $0x460] sm:$0xff]
    %v165 = vld [vmem:[%s0 + $0x468] sm:$0xff]
    %v166 = vld [vmem:[%s0 + $0x470] sm:$0xff]
    %v167 = vld [vmem:[%s0 + $0x478] sm:$0xff]
    %v168 = vld [vmem:[%s0 + $0x480] sm:$0xff]
    %v169 = vld [vmem:[%s0 + $0x488] sm:$0xff]
    %v170 = vld [vmem:[%s0 + $0x490] sm:$0xff]
    %v171 = vld [vmem:[%s0 + $0x498] sm:$0xff]
    %v172 = vld [vmem:[%s0 + $0x4a0] sm:$0xff]
    %v173 = vld [vmem:[%s0 + $0x4a8] sm:$0xff]
    %v174 = vld [vmem:[%s0 + $0x4b0] sm:$0xff]
    %v175 = vld [vmem:[%s0 + $0x4b8] sm:$0xff]
    %v176 = vld [vmem:[%s0 + $0x4c0] sm:$0xff]
    %v177 = vld [vmem:[%s0 + $0x4c8] sm:$0xff]
    %v178 = vld [vmem:[%s0 + $0x4d0] sm:$0xff]
    %v179 = vld [vmem:[%s0 + $0x4d8] sm:$0xff]
    %v180 = vld [vmem:[%s0 + $0x4e0] sm:$0xff]
    %v181 = vld [vmem:[%s0 + $0x4e8] sm:$0xff]
    %v182 = vld [vmem:[%s0 + $0x4f0] sm:$0xff]
    %v183 = vld [vmem:[%s0 + $0x4f8] sm:$0xff]
    %v184 = vld [vmem:[%s0 + $0x500] sm:$0xff]
    %v185 = vld [vmem:[%s0 + $0x508] sm:$0xff]
    %v186 = vld [vmem:[%s0 + $0x510] sm:$0xff]
    %v187 = vld [vmem:[%s0 + $0x518] sm:$0xff]
    %v188 = vld [vmem:[%s0 + $0x520] sm:$0xff]
    %v189 = vld [vmem:[%s0 + $0x528] sm:$0xff]
    %v190 = vld [vmem:[%s0 + $0x530] sm:$0xff]
    %v191 = vld [vmem:[%s0 + $0x538] sm:$0xff]
    %v192 = vld [vmem:[%s0 + $0x540] sm:$0xff]
    %v193 = vld [vmem:[%s0 + $0x548] sm:$0xff]
    %v194 = vld [vmem:[%s0 + $0x550] sm:$0xff]
    %v195 = vld [vmem:[%s0 + $0x558] sm:$0xff]
    %v196 = vld [vmem:[%s0 + $0x560] sm:$0xff]
    %v197 = vld [vmem:[%s0 + $0x568] sm:$0xff]
    %v198 = vld [vmem:[%s0 + $0x570] sm:$0xff]
    %v199 = vld [vmem:[%s0 + $0x578] sm:$0xff]
    %v200 = vld [vmem:[%s0 + $0x580] sm:$0xff]
    %v201 = vld [vmem:[%s0 + $0x588] sm:$0xff]
    %v202 = vld [vmem:[%s0 + $0x590] sm:$0xff]
    %v203 = vld [vmem:[%s0 + $0x598] sm:$0xff]
    %v204 = vld [vmem:[%s0 + $0x5a0] sm:$0xff]
    %v205 = vld [vmem:[%s0 + $0x5a8] sm:$0xff]
    %v206 = vld [vmem:[%s0 + $0x5b0] sm:$0xff]
    %v207 = vld [vmem:[%s0 + $0x5b8] sm:$0xff]
    %v208 = vld [vmem:[%s0 + $0x5c0] sm:$0xff]
    %v209 = vld [vmem:[%s0 + $0x5c8] sm:$0xff]
    %v210 = vld [vmem:[%s0 + $0x5d0] sm:$0xff]
    %v211 = vld [vmem:[%s0 + $0x5d8] sm:$0xff]
    %v212 = vld [vmem:[%s0 + $0x5e0] sm:$0xff]
    %v213 = vld [vmem:[%s0 + $0x5e8] sm:$0xff]
    %v214 = vld [vmem:[%s0 + $0x5f0] sm:$0xff]
    %v215 = vld [vmem:[%s0 + $0x5f8] sm:$0xff]
    %v216 = vld [vmem:[%s0 + $0x600] sm:$0xff]
    %v217 = vld [vmem:[%s0 + $0x608] sm:$0xff]
    %v218 = vld [vmem:[%s0 + $0x610] sm:$0xff]
    %v219 = vld [vmem:[%s0 + $0x618] sm:$0xff]
    %v220 = vld [vmem:[%s0 + $0x620] sm:$0xff]
    %v221 = vld [vmem:[%s0 + $0x628] sm:$0xff]
    %v222 = vld [vmem:[%s0 + $0x630] sm:$0xff]
    %v223 = vld [vmem:[%s0 + $0x638] sm:$0xff]
    %v224 = vld [vmem:[%s0 + $0x640] sm:$0xff]
    %v225 = vld [vmem:[%s0 + $0x648] sm:$0xff]
    %v226 = vld [vmem:[%s0 + $0x650] sm:$0xff]
    %v227 = vld [vmem:[%s0 + $0x658] sm:$0xff]
    %v228 = vld [vmem:[%s0 + $0x660] sm:$0xff]
    %v229 = vld [vmem:[%s0 + $0x668] sm:$0xff]
    %v230 = vld [vmem:[%s0 + $0x670] sm:$0xff]
    %v231 = vld [vmem:[%s0 + $0x678] sm:$0xff]
    %v232 = vld [vmem:[%s0 + $0x680] sm:$0xff]
    %v233 = vld [vmem:[%s0 + $0x688] sm:$0xff]
    %v234 = vld [vmem:[%s0 + $0x690] sm:$0xff]
    %v235 = vld [vmem:[%s0 + $0x698] sm:$0xff]
    %v236 = vld [vmem:[%s0 + $0x6a0] sm:$0xff]
    %v237 = vld [vmem:[%s0 + $0x6a8] sm:$0xff]
    %v238 = vld [vmem:[%s0 + $0x6b0] sm:$0xff]
    %v239 = vld [vmem:[%s0 + $0x6b8] sm:$0xff]
    %v240 = vld [vmem:[%s0 + $0x6c0] sm:$0xff]
    %v241 = vld [vmem:[%s0 + $0x6c8] sm:$0xff]
    %v242 = vld [vmem:[%s0 + $0x6d0] sm:$0xff]
    %v243 = vld [vmem:[%s0 + $0x6d8] sm:$0xff]
    %v244 = vld [vmem:[%s0 + $0x6e0] sm:$0xff]
    %v245 = vld [vmem:[%s0 + $0x6e8] sm:$0xff]
    %v246 = vld [vmem:[%s0 + $0x6f0] sm:$0xff]
    %v247 = vld [vmem:[%s0 + $0x6f8] sm:$0xff]
    %v248 = vld [vmem:[%s0 + $0x700] sm:$0xff]
    %v249 = vld [vmem:[%s0 + $0x708] sm:$0xff]
    %v250 = vld [vmem:[%s0 + $0x710] sm:$0xff]
    %v251 = vld [vmem:[%s0 + $0x718] sm:$0xff]
    %v252 = vld [vmem:[%s0 + $0x720] sm:$0xff]
    %v253 = vld [vmem:[%s0 + $0x728] sm:$0xff]
    %v254 = vld [vmem:[%s0 + $0x730] sm:$0xff]
    %v255 = vld [vmem:[%s0 + $0x738] sm:$0xff]
    %v256 = vld [vmem:[%s0 + $0x740] sm:$0xff]
    %v257 = vld [vmem:[%s0 + $0x748] sm:$0xff]
    %v258 = vld [vmem:[%s0 + $0x750] sm:$0xff]
    %v259 = vld [vmem:[%s0 + $0x758] sm:$0xff]
    %v260 = vld [vmem:[%s0 + $0x760] sm:$0xff]
    %v261 = vld [vmem:[%s0 + $0x768] sm:$0xff]
    %v262 = vld [vmem:[%s0 + $0x770] sm:$0xff]
    %v263 = vld [vmem:[%s0 + $0x778] sm:$0xff]
    %v264 = vld [vmem:[%s0 + $0x780] sm:$0xff]
    %v265 = vld [vmem:[%s0 + $0x788] sm:$0xff]
    %v266 = vld [vmem:[%s0 + $0x790] sm:$0xff]
    %v267 = vld [vmem:[%s0 + $0x798] sm:$0xff]
    %v268 = vld [vmem:[%s0 + $0x7a0] sm:$0xff]
    %v269 = vld [vmem:[%s0 + $0x7a8] sm:$0xff]
    %v270 = vld [vmem:[%s0 + $0x7b0] sm:$0xff]
    %v271 = vld [vmem:[%s0 + $0x7b8] sm:$0xff]
    %v272 = vld [vmem:[%s0 + $0x7c0] sm:$0xff]
    %v273 = vld [vmem:[%s0 + $0x7c8] sm:$0xff]
    %v274 = vld [vmem:[%s0 + $0x7d0] sm:$0xff]
    %v275 = vld [vmem:[%s0 + $0x7d8] sm:$0xff]
    %v276 = vld [vmem:[%s0 + $0x7e0] sm:$0xff]
    %v277 = vld [vmem:[%s0 + $0x7e8] sm:$0xff]
    %v278 = vld [vmem:[%s0 + $0x7f0] sm:$0xff]
    %v279 = vld [vmem:[%s0 + $0x7f8] sm:$0xff]
    %v280 = vld [vmem:[%s0 + $0x800] sm:$0xff]
    %v281 = vld [vmem:[%s0 + $0x808] sm:$0xff]
    %v282 = vld [vmem:[%s0 + $0x810] sm:$0xff]
    %v283 = vld [vmem:[%s0 + $0x818] sm:$0xff]
    %v284 = vld [vmem:[%s0 + $0x820] sm:$0xff]
    %v285 = vld [vmem:[%s0 + $0x828] sm:$0xff]
    %v286 = vld [vmem:[%s0 + $0x830] sm:$0xff]
    %v287 = vld [vmem:[%s0 + $0x838] sm:$0xff]
    %v288 = vld [vmem:[%s0 + $0x840] sm:$0xff]
    %v289 = vld [vmem:[%s0 + $0x848] sm:$0xff]
    %v290 = vld [vmem:[%s0 + $0x850] sm:$0xff]
    %v291 = vld [vmem:[%s0 + $0x858] sm:$0xff]
    %v292 = vld [vmem:[%s0 + $0x860] sm:$0xff]
    %v293 = vld [vmem:[%s0 + $0x868] sm:$0xff]
    %v294 = vld [vmem:[%s0 + $0x870] sm:$0xff]
    %v295 = vld [vmem:[%s0 + $0x878] sm:$0xff]
    %v296 = vld [vmem:[%s0 + $0x880] sm:$0xff]
    %v297 = vld [vmem:[%s0 + $0x888] sm:$0xff]
    %v298 = vld [vmem:[%s0 + $0x890] sm:$0xff]
    %v299 = vld [vmem:[%s0 + $0x898] sm:$0xff]
    %v300 = vld [vmem:[%s0 + $0x8a0] sm:$0xff]
    %v301 = vld [vmem:[%s0 + $0x8a8] sm:$0xff]
    %v302 = vld [vmem:[%s0 + $0x8b0] sm:$0xff]
    %v303 = vld [vmem:[%s0 + $0x8b8] sm:$0xff]
    %v304 = vld [vmem:[%s0 + $0x8c0] sm:$0xff]
    %v305 = vld [vmem:[%s0 + $0x8c8] sm:$0xff]
    %v306 = vld [vmem:[%s0 + $0x8d0] sm:$0xff]
    %v307 = vld [vmem:[%s0 + $0x8d8] sm:$0xff]
    %v308 = vld [vmem:[%s0 + $0x8e0] sm:$0xff]
    %v309 = vld [vmem:[%s0 + $0x8e8] sm:$0xff]
    %v310 = vld [vmem:[%s0 + $0x8f0] sm:$0xff]
    %v311 = vld [vmem:[%s0 + $0x8f8] sm:$0xff]
    %v312 = vld [vmem:[%s0 + $0x900] sm:$0xff]
    %v313 = vld [vmem:[%s0 + $0x908] sm:$0xff]
    %v314 = vld [vmem:[%s0 + $0x910] sm:$0xff]
    %v315 = vld [vmem:[%s0 + $0x918] sm:$0xff]
    %v316 = vld [vmem:[%s0 + $0x920] sm:$0xff]
    %v317 = vld [vmem:[%s0 + $0x928] sm:$0xff]
    %v318 = vld [vmem:[%s0 + $0x930] sm:$0xff]
    %v319 = vld [vmem:[%s0 + $0x938] sm:$0xff]
    %v320 = vld [vmem:[%s0 + $0x940] sm:$0xff]
    %v321 = vld [vmem:[%s0 + $0x948] sm:$0xff]
    %v322 = vld [vmem:[%s0 + $0x950] sm:$0xff]
    %v323 = vld [vmem:[%s0 + $0x958] sm:$0xff]
    %v324 = vld [vmem:[%s0 + $0x960] sm:$0xff]
    %v325 = vld [vmem:[%s0 + $0x968] sm:$0xff]
    %v326 = vld [vmem:[%s0 + $0x970] sm:$0xff]
    %v327 = vld [vmem:[%s0 + $0x978] sm:$0xff]
    %v328 = vld [vmem:[%s0 + $0x980] sm:$0xff]
    %v329 = vld [vmem:[%s0 + $0x988] sm:$0xff]
    %v330 = vld [vmem:[%s0 + $0x990] sm:$0xff]
    %v331 = vld [vmem:[%s0 + $0x998] sm:$0xff]
    %v332 = vld [vmem:[%s0 + $0x9a0] sm:$0xff]
    %v333 = vld [vmem:[%s0 + $0x9a8] sm:$0xff]
    %v334 = vld [vmem:[%s0 + $0x9b0] sm:$0xff]
    %v335 = vld [vmem:[%s0 + $0x9b8] sm:$0xff]
    %v336 = vld [vmem:[%s0 + $0x9c0] sm:$0xff]
    %v337 = vld [vmem:[%s0 + $0x9c8] sm:$0xff]
    %v338 = vld [vmem:[%s0 + $0x9d0] sm:$0xff]
    %v339 = vld [vmem:[%s0 + $0x9d8] sm:$0xff]
    %v340 = vld [vmem:[%s0 + $0x9e0] sm:$0xff]
    %v341 = vld [vmem:[%s0 + $0x9e8] sm:$0xff]
    %v342 = vld [vmem:[%s0 + $0x9f0] sm:$0xff]
    %v343 = vld [vmem:[%s0 + $0x9f8] sm:$0xff]
    %v344 = vld [vmem:[%s0 + $0xa00] sm:$0xff]
    %v345 = vld [vmem:[%s0 + $0xa08] sm:$0xff]
    %v346 = vld [vmem:[%s0 + $0xa10] sm:$0xff]
    %v347 = vld [vmem:[%s0 + $0xa18] sm:$0xff]
    %v348 = vld [vmem:[%s0 + $0xa20] sm:$0xff]
    %v349 = vld [vmem:[%s0 + $0xa28] sm:$0xff]
    %v350 = vld [vmem:[%s0 + $0xa30] sm:$0xff]
    %v351 = vld [vmem:[%s0 + $0xa38] sm:$0xff]
    %v352 = vld [vmem:[%s0 + $0xa40] sm:$0xff]
    %v353 = vld [vmem:[%s0 + $0xa48] sm:$0xff]
    %v354 = vld [vmem:[%s0 + $0xa50] sm:$0xff]
    %v355 = vld [vmem:[%s0 + $0xa58] sm:$0xff]
    %v356 = vld [vmem:[%s0 + $0xa60] sm:$0xff]
    %v357 = vld [vmem:[%s0 + $0xa68] sm:$0xff]
    %v358 = vld [vmem:[%s0 + $0xa70] sm:$0xff]
    %v359 = vld [vmem:[%s0 + $0xa78] sm:$0xff]
    %v360 = vld [vmem:[%s0 + $0xa80] sm:$0xff]
    %v361 = vld [vmem:[%s0 + $0xa88] sm:$0xff]
    %v362 = vld [vmem:[%s0 + $0xa90] sm:$0xff]
    %v363 = vld [vmem:[%s0 + $0xa98] sm:$0xff]
    %v364 = vld [vmem:[%s0 + $0xaa0] sm:$0xff]
    %v365 = vld [vmem:[%s0 + $0xaa8] sm:$0xff]
    %v366 = vld [vmem:[%s0 + $0xab0] sm:$0xff]
    %v367 = vld [vmem:[%s0 + $0xab8] sm:$0xff]
    %v368 = vld [vmem:[%s0 + $0xac0] sm:$0xff]
    %v369 = vld [vmem:[%s0 + $0xac8] sm:$0xff]
    %v370 = vld [vmem:[%s0 + $0xad0] sm:$0xff]
    %v371 = vld [vmem:[%s0 + $0xad8] sm:$0xff]
    %v372 = vld [vmem:[%s0 + $0xae0] sm:$0xff]
    %v373 = vld [vmem:[%s0 + $0xae8] sm:$0xff]
    %v374 = vld [vmem:[%s0 + $0xaf0] sm:$0xff]
    %v375 = vld [vmem:[%s0 + $0xaf8] sm:$0xff]
    %v376 = vld [vmem:[%s0 + $0xb00] sm:$0xff]
    %v377 = vld [vmem:[%s0 + $0xb08] sm:$0xff]
    %v378 = vld [vmem:[%s0 + $0xb10] sm:$0xff]
    %v379 = vld [vmem:[%s0 + $0xb18] sm:$0xff]
    %v380 = vld [vmem:[%s0 + $0xb20] sm:$0xff]
    %v381 = vld [vmem:[%s0 + $0xb28] sm:$0xff]
    %v382 = vld [vmem:[%s0 + $0xb30] sm:$0xff]
    %v383 = vld [vmem:[%s0 + $0xb38] sm:$0xff]
    %v384 = vld [vmem:[%s0 + $0xb40] sm:$0xff]
    %v385 = vld [vmem:[%s0 + $0xb48] sm:$0xff]
    %v386 = vld [vmem:[%s0 + $0xb50] sm:$0xff]
    %v387 = vld [vmem:[%s0 + $0xb58] sm:$0xff]
    %v388 = vld [vmem:[%s0 + $0xb60] sm:$0xff]
    %v389 = vld [vmem:[%s0 + $0xb68] sm:$0xff]
    %v390 = vld [vmem:[%s0 + $0xb70] sm:$0xff]
    %v391 = vld [vmem:[%s0 + $0xb78] sm:$0xff]
    %v392 = vld [vmem:[%s0 + $0xb80] sm:$0xff]
    %v393 = vld [vmem:[%s0 + $0xb88] sm:$0xff]
    %v394 = vld [vmem:[%s0 + $0xb90] sm:$0xff]
    %v395 = vld [vmem:[%s0 + $0xb98] sm:$0xff]
    %v396 = vld [vmem:[%s0 + $0xba0] sm:$0xff]
    %v397 = vld [vmem:[%s0 + $0xba8] sm:$0xff]
    %v398 = vld [vmem:[%s0 + $0xbb0] sm:$0xff]
    %v399 = vld [vmem:[%s0 + $0xbb8] sm:$0xff]
    %v400 = vld [vmem:[%s0 + $0xbc0] sm:$0xff]
    %v401 = vld [vmem:[%s0 + $0xbc8] sm:$0xff]
    %v402 = vld [vmem:[%s0 + $0xbd0] sm:$0xff]
    %v403 = vld [vmem:[%s0 + $0xbd8] sm:$0xff]
    %v404 = vld [vmem:[%s0 + $0xbe0] sm:$0xff]
    %v405 = vld [vmem:[%s0 + $0xbe8] sm:$0xff]
    %v406 = vld [vmem:[%s0 + $0xbf0] sm:$0xff]
    %v407 = vld [vmem:[%s0 + $0xbf8] sm:$0xff]
    %v408 = vld [vmem:[%s0 + $0xc00] sm:$0xff]
    %v409 = vld [vmem:[%s0 + $0xc08] sm:$0xff]
    %v410 = vld [vmem:[%s0 + $0xc10] sm:$0xff]
    %v411 = vld [vmem:[%s0 + $0xc18] sm:$0xff]
    %v412 = vld [vmem:[%s0 + $0xc20] sm:$0xff]
    %v413 = vld [vmem:[%s0 + $0xc28] sm:$0xff]
    %v414 = vld [vmem:[%s0 + $0xc30] sm:$0xff]
    %v415 = vld [vmem:[%s0 + $0xc38] sm:$0xff]
    %v416 = vld [vmem:[%s0 + $0xc40] sm:$0xff]
    %v417 = vld [vmem:[%s0 + $0xc48] sm:$0xff]
    %v418 = vld [vmem:[%s0 + $0xc50] sm:$0xff]
    %v419 = vld [vmem:[%s0 + $0xc58] sm:$0xff]
    %v420 = vld [vmem:[%s0 + $0xc60] sm:$0xff]
    %v421 = vld [vmem:[%s0 + $0xc68] sm:$0xff]
    %v422 = vld [vmem:[%s0 + $0xc70] sm:$0xff]
    %v423 = vld [vmem:[%s0 + $0xc78] sm:$0xff]
    %v424 = vld [vmem:[%s0 + $0xc80] sm:$0xff]
    %v425 = vld [vmem:[%s0 + $0xc88] sm:$0xff]
    %v426 = vld [vmem:[%s0 + $0xc90] sm:$0xff]
    %v427 = vld [vmem:[%s0 + $0xc98] sm:$0xff]
    %v428 = vld [vmem:[%s0 + $0xca0] sm:$0xff]
    %v429 = vld [vmem:[%s0 + $0xca8] sm:$0xff]
    %v430 = vld [vmem:[%s0 + $0xcb0] sm:$0xff]
    %v431 = vld [vmem:[%s0 + $0xcb8] sm:$0xff]
    %v432 = vld [vmem:[%s0 + $0xcc0] sm:$0xff]
    %v433 = vld [vmem:[%s0 + $0xcc8] sm:$0xff]
    %v434 = vld [vmem:[%s0 + $0xcd0] sm:$0xff]
    %v435 = vld [vmem:[%s0 + $0xcd8] sm:$0xff]
    %v436 = vld [vmem:[%s0 + $0xce0] sm:$0xff]
    %v437 = vld [vmem:[%s0 + $0xce8] sm:$0xff]
    %v438 = vld [vmem:[%s0 + $0xcf0] sm:$0xff]
    %v439 = vld [vmem:[%s0 + $0xcf8] sm:$0xff]
    %v440 = vld [vmem:[%s0 + $0xd00] sm:$0xff]
    %v441 = vld [vmem:[%s0 + $0xd08] sm:$0xff]
    %v442 = vld [vmem:[%s0 + $0xd10] sm:$0xff]
    %v443 = vld [vmem:[%s0 + $0xd18] sm:$0xff]
    %v444 = vld [vmem:[%s0 + $0xd20] sm:$0xff]
    %v445 = vld [vmem:[%s0 + $0xd28] sm:$0xff]
    %v446 = vld [vmem:[%s0 + $0xd30] sm:$0xff]
    %v447 = vld [vmem:[%s0 + $0xd38] sm:$0xff]
    %v448 = vld [vmem:[%s0 + $0xd40] sm:$0xff]
    %v449 = vld [vmem:[%s0 + $0xd48] sm:$0xff]
    %v450 = vld [vmem:[%s0 + $0xd50] sm:$0xff]
    %v451 = vld [vmem:[%s0 + $0xd58] sm:$0xff]
    %v452 = vld [vmem:[%s0 + $0xd60] sm:$0xff]
    %v453 = vld [vmem:[%s0 + $0xd68] sm:$0xff]
    %v454 = vld [vmem:[%s0 + $0xd70] sm:$0xff]
    %v455 = vld [vmem:[%s0 + $0xd78] sm:$0xff]
    %v456 = vld [vmem:[%s0 + $0xd80] sm:$0xff]
    %v457 = vld [vmem:[%s0 + $0xd88] sm:$0xff]
    %v458 = vld [vmem:[%s0 + $0xd90] sm:$0xff]
    %v459 = vld [vmem:[%s0 + $0xd98] sm:$0xff]
    %v460 = vld [vmem:[%s0 + $0xda0] sm:$0xff]
    %v461 = vld [vmem:[%s0 + $0xda8] sm:$0xff]
    %v462 = vld [vmem:[%s0 + $0xdb0] sm:$0xff]
    %v463 = vld [vmem:[%s0 + $0xdb8] sm:$0xff]
    %v464 = vld [vmem:[%s0 + $0xdc0] sm:$0xff]
    %v465 = vld [vmem:[%s0 + $0xdc8] sm:$0xff]
    %v466 = vld [vmem:[%s0 + $0xdd0] sm:$0xff]
    %v467 = vld [vmem:[%s0 + $0xdd8] sm:$0xff]
    %v468 = vld [vmem:[%s0 + $0xde0] sm:$0xff]
    %v469 = vld [vmem:[%s0 + $0xde8] sm:$0xff]
    %v470 = vld [vmem:[%s0 + $0xdf0] sm:$0xff]
    %v471 = vld [vmem:[%s0 + $0xdf8] sm:$0xff]
    %v472 = vld [vmem:[%s0 + $0xe00] sm:$0xff]
    %v473 = vld [vmem:[%s0 + $0xe08] sm:$0xff]
    %v474 = vld [vmem:[%s0 + $0xe10] sm:$0xff]
    %v475 = vld [vmem:[%s0 + $0xe18] sm:$0xff]
    %v476 = vld [vmem:[%s0 + $0xe20] sm:$0xff]
    %v477 = vld [vmem:[%s0 + $0xe28] sm:$0xff]
    %v478 = vld [vmem:[%s0 + $0xe30] sm:$0xff]
    %v479 = vld [vmem:[%s0 + $0xe38] sm:$0xff]
    %v480 = vld [vmem:[%s0 + $0xe40] sm:$0xff]
    %v481 = vld [vmem:[%s0 + $0xe48] sm:$0xff]
    %v482 = vld [vmem:[%s0 + $0xe50] sm:$0xff]
    %v483 = vld [vmem:[%s0 + $0xe58] sm:$0xff]
    %v484 = vld [vmem:[%s0 + $0xe60] sm:$0xff]
    %v485 = vld [vmem:[%s0 + $0xe68] sm:$0xff]
    %v486 = vld [vmem:[%s0 + $0xe70] sm:$0xff]
    %v487 = vld [vmem:[%s0 + $0xe78] sm:$0xff]
    %v488 = vld [vmem:[%s0 + $0xe80] sm:$0xff]
    %v489 = vld [vmem:[%s0 + $0xe88] sm:$0xff]
    %v490 = vld [vmem:[%s0 + $0xe90] sm:$0xff]
    %v491 = vld [vmem:[%s0 + $0xe98] sm:$0xff]
    %v492 = vld [vmem:[%s0 + $0xea0] sm:$0xff]
    %v493 = vld [vmem:[%s0 + $0xea8] sm:$0xff]
    %v494 = vld [vmem:[%s0 + $0xeb0] sm:$0xff]
    %v495 = vld [vmem:[%s0 + $0xeb8] sm:$0xff]
    %v496 = vld [vmem:[%s0 + $0xec0] sm:$0xff]
    %v497 = vld [vmem:[%s0 + $0xec8] sm:$0xff]
    %v498 = vld [vmem:[%s0 + $0xed0] sm:$0xff]
    %v499 = vld [vmem:[%s0 + $0xed8] sm:$0xff]
    %v500 = vld [vmem:[%s0 + $0xee0] sm:$0xff]
    %v501 = vld [vmem:[%s0 + $0xee8] sm:$0xff]
    %v502 = vld [vmem:[%s0 + $0xef0] sm:$0xff]
    %v503 = vld [vmem:[%s0 + $0xef8] sm:$0xff]
    %v504 = vld [vmem:[%s0 + $0xf00] sm:$0xff]
    %v505 = vld [vmem:[%s0 + $0xf08] sm:$0xff]
    %v506 = vld [vmem:[%s0 + $0xf10] sm:$0xff]
    %v507 = vld [vmem:[%s0 + $0xf18] sm:$0xff]
    %v508 = vld [vmem:[%s0 + $0xf20] sm:$0xff]
    %v509 = vld [vmem:[%s0 + $0xf28] sm:$0xff]
    %v510 = vld [vmem:[%s0 + $0xf30] sm:$0xff]
    %v511 = vld [vmem:[%s0 + $0xf38] sm:$0xff]
    %v512 = vld [vmem:[%s0 + $0xf40] sm:$0xff]
    %v513 = vld [vmem:[%s0 + $0xf48] sm:$0xff]
    %v514 = vld [vmem:[%s0 + $0xf50] sm:$0xff]
    %v515 = vld [vmem:[%s0 + $0xf58] sm:$0xff]
    %v516 = vld [vmem:[%s0 + $0xf60] sm:$0xff]
    %v517 = vld [vmem:[%s0 + $0xf68] sm:$0xff]
    %v518 = vld [vmem:[%s0 + $0xf70] sm:$0xff]
    %v519 = vld [vmem:[%s0 + $0xf78] sm:$0xff]
    %v520 = vld [vmem:[%s0 + $0xf80] sm:$0xff]
    %v521 = vld [vmem:[%s0 + $0xf88] sm:$0xff]
    %v522 = vld [vmem:[%s0 + $0xf90] sm:$0xff]
    %v523 = vld [vmem:[%s0 + $0xf98] sm:$0xff]
    %v524 = vld [vmem:[%s0 + $0xfa0] sm:$0xff]
    %v525 = vld [vmem:[%s0 + $0xfa8] sm:$0xff]
    %v526 = vld [vmem:[%s0 + $0xfb0] sm:$0xff]
    %v527 = vld [vmem:[%s0 + $0xfb8] sm:$0xff]
    %v528 = vld [vmem:[%s0 + $0xfc0] sm:$0xff]
    %v529 = vld [vmem:[%s0 + $0xfc8] sm:$0xff]
    %v530 = vld [vmem:[%s0 + $0xfd0] sm:$0xff]
    %v531 = vld [vmem:[%s0 + $0xfd8] sm:$0xff]
    %v532 = vld [vmem:[%s0 + $0xfe0] sm:$0xff]
    %v533 = vld [vmem:[%s0 + $0xfe8] sm:$0xff]
    %v534 = vld [vmem:[%s0 + $0xff0] sm:$0xff]
    %v535 = vld [vmem:[%s0 + $0xff8] sm:$0xff]
    %v536 = vadd.f32 %v24, %v25
    %v537 = vadd.f32 %v536, %v26
    %v538 = vadd.f32 %v537, %v27
    %v539 = vadd.f32 %v538, %v28
    %v540 = vadd.f32 %v539, %v29
    %v541 = vadd.f32 %v540, %v30
    %v542 = vadd.f32 %v541, %v31
    %v543 = vadd.f32 %v542, %v32
    %v544 = vadd.f32 %v543, %v33
    %v545 = vadd.f32 %v544, %v34
    %v546 = vadd.f32 %v545, %v35
    %v547 = vadd.f32 %v546, %v36
    %v548 = vadd.f32 %v547, %v37
    %v549 = vadd.f32 %v548, %v38
    %v550 = vadd.f32 %v549, %v39
    %v551 = vadd.f32 %v550, %v40
    %v552 = vadd.f32 %v551, %v41
    %v553 = vadd.f32 %v552, %v42
    %v554 = vadd.f32 %v553, %v43
    %v555 = vadd.f32 %v554, %v44
    %v556 = vadd.f32 %v555, %v45
    %v557 = vadd.f32 %v556, %v46
    %v558 = vadd.f32 %v557, %v47
    %v559 = vadd.f32 %v558, %v48
    %v560 = vadd.f32 %v559, %v49
    %v561 = vadd.f32 %v560, %v50
    %v562 = vadd.f32 %v561, %v51
    %v563 = vadd.f32 %v562, %v52
    %v564 = vadd.f32 %v563, %v53
    %v565 = vadd.f32 %v564, %v54
    %v566 = vadd.f32 %v565, %v55
    %v567 = vadd.f32 %v566, %v56
    %v568 = vadd.f32 %v567, %v57
    %v569 = vadd.f32 %v568, %v58
    %v570 = vadd.f32 %v569, %v59
    %v571 = vadd.f32 %v570, %v60
    %v572 = vadd.f32 %v571, %v61
    %v573 = vadd.f32 %v572, %v62
    %v574 = vadd.f32 %v573, %v63
    %v575 = vadd.f32 %v574, %v64
    %v576 = vadd.f32 %v575, %v65
    %v577 = vadd.f32 %v576, %v66
    %v578 = vadd.f32 %v577, %v67
    %v579 = vadd.f32 %v578, %v68
    %v580 = vadd.f32 %v579, %v69
    %v581 = vadd.f32 %v580, %v70
    %v582 = vadd.f32 %v581, %v71
    %v583 = vadd.f32 %v582, %v72
    %v584 = vadd.f32 %v583, %v73
    %v585 = vadd.f32 %v584, %v74
    %v586 = vadd.f32 %v585, %v75
    %v587 = vadd.f32 %v586, %v76
    %v588 = vadd.f32 %v587, %v77
    %v589 = vadd.f32 %v588, %v78
    %v590 = vadd.f32 %v589, %v79
    %v591 = vadd.f32 %v590, %v80
    %v592 = vadd.f32 %v591, %v81
    %v593 = vadd.f32 %v592, %v82
    %v594 = vadd.f32 %v593, %v83
    %v595 = vadd.f32 %v594, %v84
    %v596 = vadd.f32 %v595, %v85
    %v597 = vadd.f32 %v596, %v86
    %v598 = vadd.f32 %v597, %v87
    %v599 = vadd.f32 %v598, %v88
    %v600 = vadd.f32 %v599, %v89
    %v601 = vadd.f32 %v600, %v90
    %v602 = vadd.f32 %v601, %v91
    %v603 = vadd.f32 %v602, %v92
    %v604 = vadd.f32 %v603, %v93
    %v605 = vadd.f32 %v604, %v94
    %v606 = vadd.f32 %v605, %v95
    %v607 = vadd.f32 %v606, %v96
    %v608 = vadd.f32 %v607, %v97
    %v609 = vadd.f32 %v608, %v98
    %v610 = vadd.f32 %v609, %v99
    %v611 = vadd.f32 %v610, %v100
    %v612 = vadd.f32 %v611, %v101
    %v613 = vadd.f32 %v612, %v102
    %v614 = vadd.f32 %v613, %v103
    %v615 = vadd.f32 %v614, %v104
    %v616 = vadd.f32 %v615, %v105
    %v617 = vadd.f32 %v616, %v106
    %v618 = vadd.f32 %v617, %v107
    %v619 = vadd.f32 %v618, %v108
    %v620 = vadd.f32 %v619, %v109
    %v621 = vadd.f32 %v620, %v110
    %v622 = vadd.f32 %v621, %v111
    %v623 = vadd.f32 %v622, %v112
    %v624 = vadd.f32 %v623, %v113
    %v625 = vadd.f32 %v624, %v114
    %v626 = vadd.f32 %v625, %v115
    %v627 = vadd.f32 %v626, %v116
    %v628 = vadd.f32 %v627, %v117
    %v629 = vadd.f32 %v628, %v118
    %v630 = vadd.f32 %v629, %v119
    %v631 = vadd.f32 %v630, %v120
    %v632 = vadd.f32 %v631, %v121
    %v633 = vadd.f32 %v632, %v122
    %v634 = vadd.f32 %v633, %v123
    %v635 = vadd.f32 %v634, %v124
    %v636 = vadd.f32 %v635, %v125
    %v637 = vadd.f32 %v636, %v126
    %v638 = vadd.f32 %v637, %v127
    %v639 = vadd.f32 %v638, %v128
    %v640 = vadd.f32 %v639, %v129
    %v641 = vadd.f32 %v640, %v130
    %v642 = vadd.f32 %v641, %v131
    %v643 = vadd.f32 %v642, %v132
    %v644 = vadd.f32 %v643, %v133
    %v645 = vadd.f32 %v644, %v134
    %v646 = vadd.f32 %v645, %v135
    %v647 = vadd.f32 %v646, %v136
    %v648 = vadd.f32 %v647, %v137
    %v649 = vadd.f32 %v648, %v138
    %v650 = vadd.f32 %v649, %v139
    %v651 = vadd.f32 %v650, %v140
    %v652 = vadd.f32 %v651, %v141
    %v653 = vadd.f32 %v652, %v142
    %v654 = vadd.f32 %v653, %v143
    %v655 = vadd.f32 %v654, %v144
    %v656 = vadd.f32 %v655, %v145
    %v657 = vadd.f32 %v656, %v146
    %v658 = vadd.f32 %v657, %v147
    %v659 = vadd.f32 %v658, %v148
    %v660 = vadd.f32 %v659, %v149
    %v661 = vadd.f32 %v660, %v150
    %v662 = vadd.f32 %v661, %v151
    %v663 = vadd.f32 %v662, %v152
    %v664 = vadd.f32 %v663, %v153
    %v665 = vadd.f32 %v664, %v154
    %v666 = vadd.f32 %v665, %v155
    %v667 = vadd.f32 %v666, %v156
    %v668 = vadd.f32 %v667, %v157
    %v669 = vadd.f32 %v668, %v158
    %v670 = vadd.f32 %v669, %v159
    %v671 = vadd.f32 %v670, %v160
    %v672 = vadd.f32 %v671, %v161
    %v673 = vadd.f32 %v672, %v162
    %v674 = vadd.f32 %v673, %v163
    %v675 = vadd.f32 %v674, %v164
    %v676 = vadd.f32 %v675, %v165
    %v677 = vadd.f32 %v676, %v166
    %v678 = vadd.f32 %v677, %v167
    %v679 = vadd.f32 %v678, %v168
    %v680 = vadd.f32 %v679, %v169
    %v681 = vadd.f32 %v680, %v170
    %v682 = vadd.f32 %v681, %v171
    %v683 = vadd.f32 %v682, %v172
    %v684 = vadd.f32 %v683, %v173
    %v685 = vadd.f32 %v684, %v174
    %v686 = vadd.f32 %v685, %v175
    %v687 = vadd.f32 %v686, %v176
    %v688 = vadd.f32 %v687, %v177
    %v689 = vadd.f32 %v688, %v178
    %v690 = vadd.f32 %v689, %v179
    %v691 = vadd.f32 %v690, %v180
    %v692 = vadd.f32 %v691, %v181
    %v693 = vadd.f32 %v692, %v182
    %v694 = vadd.f32 %v693, %v183
    %v695 = vadd.f32 %v694, %v184
    %v696 = vadd.f32 %v695, %v185
    %v697 = vadd.f32 %v696, %v186
    %v698 = vadd.f32 %v697, %v187
    %v699 = vadd.f32 %v698, %v188
    %v700 = vadd.f32 %v699, %v189
    %v701 = vadd.f32 %v700, %v190
    %v702 = vadd.f32 %v701, %v191
    %v703 = vadd.f32 %v702, %v192
    %v704 = vadd.f32 %v703, %v193
    %v705 = vadd.f32 %v704, %v194
    %v706 = vadd.f32 %v705, %v195
    %v707 = vadd.f32 %v706, %v196
    %v708 = vadd.f32 %v707, %v197
    %v709 = vadd.f32 %v708, %v198
    %v710 = vadd.f32 %v709, %v199
    %v711 = vadd.f32 %v710, %v200
    %v712 = vadd.f32 %v711, %v201
    %v713 = vadd.f32 %v712, %v202
    %v714 = vadd.f32 %v713, %v203
    %v715 = vadd.f32 %v714, %v204
    %v716 = vadd.f32 %v715, %v205
    %v717 = vadd.f32 %v716, %v206
    %v718 = vadd.f32 %v717, %v207
    %v719 = vadd.f32 %v718, %v208
    %v720 = vadd.f32 %v719, %v209
    %v721 = vadd.f32 %v720, %v210
    %v722 = vadd.f32 %v721, %v211
    %v723 = vadd.f32 %v722, %v212
    %v724 = vadd.f32 %v723, %v213
    %v725 = vadd.f32 %v724, %v214
    %v726 = vadd.f32 %v725, %v215
    %v727 = vadd.f32 %v726, %v216
    %v728 = vadd.f32 %v727, %v217
    %v729 = vadd.f32 %v728, %v218
    %v730 = vadd.f32 %v729, %v219
    %v731 = vadd.f32 %v730, %v220
    %v732 = vadd.f32 %v731, %v221
    %v733 = vadd.f32 %v732, %v222
    %v734 = vadd.f32 %v733, %v223
    %v735 = vadd.f32 %v734, %v224
    %v736 = vadd.f32 %v735, %v225
    %v737 = vadd.f32 %v736, %v226
    %v738 = vadd.f32 %v737, %v227
    %v739 = vadd.f32 %v738, %v228
    %v740 = vadd.f32 %v739, %v229
    %v741 = vadd.f32 %v740, %v230
    %v742 = vadd.f32 %v741, %v231
    %v743 = vadd.f32 %v742, %v232
    %v744 = vadd.f32 %v743, %v233
    %v745 = vadd.f32 %v744, %v234
    %v746 = vadd.f32 %v745, %v235
    %v747 = vadd.f32 %v746, %v236
    %v748 = vadd.f32 %v747, %v237
    %v749 = vadd.f32 %v748, %v238
    %v750 = vadd.f32 %v749, %v239
    %v751 = vadd.f32 %v750, %v240
    %v752 = vadd.f32 %v751, %v241
    %v753 = vadd.f32 %v752, %v242
    %v754 = vadd.f32 %v753, %v243
    %v755 = vadd.f32 %v754, %v244
    %v756 = vadd.f32 %v755, %v245
    %v757 = vadd.f32 %v756, %v246
    %v758 = vadd.f32 %v757, %v247
    %v759 = vadd.f32 %v758, %v248
    %v760 = vadd.f32 %v759, %v249
    %v761 = vadd.f32 %v760, %v250
    %v762 = vadd.f32 %v761, %v251
    %v763 = vadd.f32 %v762, %v252
    %v764 = vadd.f32 %v763, %v253
    %v765 = vadd.f32 %v764, %v254
    %v766 = vadd.f32 %v765, %v255
    %v767 = vadd.f32 %v766, %v256
    %v768 = vadd.f32 %v767, %v257
    %v769 = vadd.f32 %v768, %v258
    %v770 = vadd.f32 %v769, %v259
    %v771 = vadd.f32 %v770, %v260
    %v772 = vadd.f32 %v771, %v261
    %v773 = vadd.f32 %v772, %v262
    %v774 = vadd.f32 %v773, %v263
    %v775 = vadd.f32 %v774, %v264
    %v776 = vadd.f32 %v775, %v265
    %v777 = vadd.f32 %v776, %v266
    %v778 = vadd.f32 %v777, %v267
    %v779 = vadd.f32 %v778, %v268
    %v780 = vadd.f32 %v779, %v269
    %v781 = vadd.f32 %v780, %v270
    %v782 = vadd.f32 %v781, %v271
    %v783 = vadd.f32 %v782, %v272
    %v784 = vadd.f32 %v783, %v273
    %v785 = vadd.f32 %v784, %v274
    %v786 = vadd.f32 %v785, %v275
    %v787 = vadd.f32 %v786, %v276
    %v788 = vadd.f32 %v787, %v277
    %v789 = vadd.f32 %v788, %v278
    %v790 = vadd.f32 %v789, %v279
    %v791 = vrot.slane %v790, 4
    %v792 = vadd.f32 %v790, %v791
    %v793 = vrot.slane %v792, 2
    %v794 = vadd.f32 %v792, %v793
    %v795 = vrot.slane %v794, 1
    %v796 = vadd.f32 %v794, %v795
    %v797 = vadd.f32 %v280, %v281
    %v798 = vadd.f32 %v797, %v282
    %v799 = vadd.f32 %v798, %v283
    %v800 = vadd.f32 %v799, %v284
    %v801 = vadd.f32 %v800, %v285
    %v802 = vadd.f32 %v801, %v286
    %v803 = vadd.f32 %v802, %v287
    %v804 = vadd.f32 %v803, %v288
    %v805 = vadd.f32 %v804, %v289
    %v806 = vadd.f32 %v805, %v290
    %v807 = vadd.f32 %v806, %v291
    %v808 = vadd.f32 %v807, %v292
    %v809 = vadd.f32 %v808, %v293
    %v810 = vadd.f32 %v809, %v294
    %v811 = vadd.f32 %v810, %v295
    %v812 = vadd.f32 %v811, %v296
    %v813 = vadd.f32 %v812, %v297
    %v814 = vadd.f32 %v813, %v298
    %v815 = vadd.f32 %v814, %v299
    %v816 = vadd.f32 %v815, %v300
    %v817 = vadd.f32 %v816, %v301
    %v818 = vadd.f32 %v817, %v302
    %v819 = vadd.f32 %v818, %v303
    %v820 = vadd.f32 %v819, %v304
    %v821 = vadd.f32 %v820, %v305
    %v822 = vadd.f32 %v821, %v306
    %v823 = vadd.f32 %v822, %v307
    %v824 = vadd.f32 %v823, %v308
    %v825 = vadd.f32 %v824, %v309
    %v826 = vadd.f32 %v825, %v310
    %v827 = vadd.f32 %v826, %v311
    %v828 = vadd.f32 %v827, %v312
    %v829 = vadd.f32 %v828, %v313
    %v830 = vadd.f32 %v829, %v314
    %v831 = vadd.f32 %v830, %v315
    %v832 = vadd.f32 %v831, %v316
    %v833 = vadd.f32 %v832, %v317
    %v834 = vadd.f32 %v833, %v318
    %v835 = vadd.f32 %v834, %v319
    %v836 = vadd.f32 %v835, %v320
    %v837 = vadd.f32 %v836, %v321
    %v838 = vadd.f32 %v837, %v322
    %v839 = vadd.f32 %v838, %v323
    %v840 = vadd.f32 %v839, %v324
    %v841 = vadd.f32 %v840, %v325
    %v842 = vadd.f32 %v841, %v326
    %v843 = vadd.f32 %v842, %v327
    %v844 = vadd.f32 %v843, %v328
    %v845 = vadd.f32 %v844, %v329
    %v846 = vadd.f32 %v845, %v330
    %v847 = vadd.f32 %v846, %v331
    %v848 = vadd.f32 %v847, %v332
    %v849 = vadd.f32 %v848, %v333
    %v850 = vadd.f32 %v849, %v334
    %v851 = vadd.f32 %v850, %v335
    %v852 = vadd.f32 %v851, %v336
    %v853 = vadd.f32 %v852, %v337
    %v854 = vadd.f32 %v853, %v338
    %v855 = vadd.f32 %v854, %v339
    %v856 = vadd.f32 %v855, %v340
    %v857 = vadd.f32 %v856, %v341
    %v858 = vadd.f32 %v857, %v342
    %v859 = vadd.f32 %v858, %v343
    %v860 = vadd.f32 %v859, %v344
    %v861 = vadd.f32 %v860, %v345
    %v862 = vadd.f32 %v861, %v346
    %v863 = vadd.f32 %v862, %v347
    %v864 = vadd.f32 %v863, %v348
    %v865 = vadd.f32 %v864, %v349
    %v866 = vadd.f32 %v865, %v350
    %v867 = vadd.f32 %v866, %v351
    %v868 = vadd.f32 %v867, %v352
    %v869 = vadd.f32 %v868, %v353
    %v870 = vadd.f32 %v869, %v354
    %v871 = vadd.f32 %v870, %v355
    %v872 = vadd.f32 %v871, %v356
    %v873 = vadd.f32 %v872, %v357
    %v874 = vadd.f32 %v873, %v358
    %v875 = vadd.f32 %v874, %v359
    %v876 = vadd.f32 %v875, %v360
    %v877 = vadd.f32 %v876, %v361
    %v878 = vadd.f32 %v877, %v362
    %v879 = vadd.f32 %v878, %v363
    %v880 = vadd.f32 %v879, %v364
    %v881 = vadd.f32 %v880, %v365
    %v882 = vadd.f32 %v881, %v366
    %v883 = vadd.f32 %v882, %v367
    %v884 = vadd.f32 %v883, %v368
    %v885 = vadd.f32 %v884, %v369
    %v886 = vadd.f32 %v885, %v370
    %v887 = vadd.f32 %v886, %v371
    %v888 = vadd.f32 %v887, %v372
    %v889 = vadd.f32 %v888, %v373
    %v890 = vadd.f32 %v889, %v374
    %v891 = vadd.f32 %v890, %v375
    %v892 = vadd.f32 %v891, %v376
    %v893 = vadd.f32 %v892, %v377
    %v894 = vadd.f32 %v893, %v378
    %v895 = vadd.f32 %v894, %v379
    %v896 = vadd.f32 %v895, %v380
    %v897 = vadd.f32 %v896, %v381
    %v898 = vadd.f32 %v897, %v382
    %v899 = vadd.f32 %v898, %v383
    %v900 = vadd.f32 %v899, %v384
    %v901 = vadd.f32 %v900, %v385
    %v902 = vadd.f32 %v901, %v386
    %v903 = vadd.f32 %v902, %v387
    %v904 = vadd.f32 %v903, %v388
    %v905 = vadd.f32 %v904, %v389
    %v906 = vadd.f32 %v905, %v390
    %v907 = vadd.f32 %v906, %v391
    %v908 = vadd.f32 %v907, %v392
    %v909 = vadd.f32 %v908, %v393
    %v910 = vadd.f32 %v909, %v394
    %v911 = vadd.f32 %v910, %v395
    %v912 = vadd.f32 %v911, %v396
    %v913 = vadd.f32 %v912, %v397
    %v914 = vadd.f32 %v913, %v398
    %v915 = vadd.f32 %v914, %v399
    %v916 = vadd.f32 %v915, %v400
    %v917 = vadd.f32 %v916, %v401
    %v918 = vadd.f32 %v917, %v402
    %v919 = vadd.f32 %v918, %v403
    %v920 = vadd.f32 %v919, %v404
    %v921 = vadd.f32 %v920, %v405
    %v922 = vadd.f32 %v921, %v406
    %v923 = vadd.f32 %v922, %v407
    %v924 = vadd.f32 %v923, %v408
    %v925 = vadd.f32 %v924, %v409
    %v926 = vadd.f32 %v925, %v410
    %v927 = vadd.f32 %v926, %v411
    %v928 = vadd.f32 %v927, %v412
    %v929 = vadd.f32 %v928, %v413
    %v930 = vadd.f32 %v929, %v414
    %v931 = vadd.f32 %v930, %v415
    %v932 = vadd.f32 %v931, %v416
    %v933 = vadd.f32 %v932, %v417
    %v934 = vadd.f32 %v933, %v418
    %v935 = vadd.f32 %v934, %v419
    %v936 = vadd.f32 %v935, %v420
    %v937 = vadd.f32 %v936, %v421
    %v938 = vadd.f32 %v937, %v422
    %v939 = vadd.f32 %v938, %v423
    %v940 = vadd.f32 %v939, %v424
    %v941 = vadd.f32 %v940, %v425
    %v942 = vadd.f32 %v941, %v426
    %v943 = vadd.f32 %v942, %v427
    %v944 = vadd.f32 %v943, %v428
    %v945 = vadd.f32 %v944, %v429
    %v946 = vadd.f32 %v945, %v430
    %v947 = vadd.f32 %v946, %v431
    %v948 = vadd.f32 %v947, %v432
    %v949 = vadd.f32 %v948, %v433
    %v950 = vadd.f32 %v949, %v434
    %v951 = vadd.f32 %v950, %v435
    %v952 = vadd.f32 %v951, %v436
    %v953 = vadd.f32 %v952, %v437
    %v954 = vadd.f32 %v953, %v438
    %v955 = vadd.f32 %v954, %v439
    %v956 = vadd.f32 %v955, %v440
    %v957 = vadd.f32 %v956, %v441
    %v958 = vadd.f32 %v957, %v442
    %v959 = vadd.f32 %v958, %v443
    %v960 = vadd.f32 %v959, %v444
    %v961 = vadd.f32 %v960, %v445
    %v962 = vadd.f32 %v961, %v446
    %v963 = vadd.f32 %v962, %v447
    %v964 = vadd.f32 %v963, %v448
    %v965 = vadd.f32 %v964, %v449
    %v966 = vadd.f32 %v965, %v450
    %v967 = vadd.f32 %v966, %v451
    %v968 = vadd.f32 %v967, %v452
    %v969 = vadd.f32 %v968, %v453
    %v970 = vadd.f32 %v969, %v454
    %v971 = vadd.f32 %v970, %v455
    %v972 = vadd.f32 %v971, %v456
    %v973 = vadd.f32 %v972, %v457
    %v974 = vadd.f32 %v973, %v458
    %v975 = vadd.f32 %v974, %v459
    %v976 = vadd.f32 %v975, %v460
    %v977 = vadd.f32 %v976, %v461
    %v978 = vadd.f32 %v977, %v462
    %v979 = vadd.f32 %v978, %v463
    %v980 = vadd.f32 %v979, %v464
    %v981 = vadd.f32 %v980, %v465
    %v982 = vadd.f32 %v981, %v466
    %v983 = vadd.f32 %v982, %v467
    %v984 = vadd.f32 %v983, %v468
    %v985 = vadd.f32 %v984, %v469
    %v986 = vadd.f32 %v985, %v470
    %v987 = vadd.f32 %v986, %v471
    %v988 = vadd.f32 %v987, %v472
    %v989 = vadd.f32 %v988, %v473
    %v990 = vadd.f32 %v989, %v474
    %v991 = vadd.f32 %v990, %v475
    %v992 = vadd.f32 %v991, %v476
    %v993 = vadd.f32 %v992, %v477
    %v994 = vadd.f32 %v993, %v478
    %v995 = vadd.f32 %v994, %v479
    %v996 = vadd.f32 %v995, %v480
    %v997 = vadd.f32 %v996, %v481
    %v998 = vadd.f32 %v997, %v482
    %v999 = vadd.f32 %v998, %v483
    %v1000 = vadd.f32 %v999, %v484
    %v1001 = vadd.f32 %v1000, %v485
    %v1002 = vadd.f32 %v1001, %v486
    %v1003 = vadd.f32 %v1002, %v487
    %v1004 = vadd.f32 %v1003, %v488
    %v1005 = vadd.f32 %v1004, %v489
    %v1006 = vadd.f32 %v1005, %v490
    %v1007 = vadd.f32 %v1006, %v491
    %v1008 = vadd.f32 %v1007, %v492
    %v1009 = vadd.f32 %v1008, %v493
    %v1010 = vadd.f32 %v1009, %v494
    %v1011 = vadd.f32 %v1010, %v495
    %v1012 = vadd.f32 %v1011, %v496
    %v1013 = vadd.f32 %v1012, %v497
    %v1014 = vadd.f32 %v1013, %v498
    %v1015 = vadd.f32 %v1014, %v499
    %v1016 = vadd.f32 %v1015, %v500
    %v1017 = vadd.f32 %v1016, %v501
    %v1018 = vadd.f32 %v1017, %v502
    %v1019 = vadd.f32 %v1018, %v503
    %v1020 = vadd.f32 %v1019, %v504
    %v1021 = vadd.f32 %v1020, %v505
    %v1022 = vadd.f32 %v1021, %v506
    %v1023 = vadd.f32 %v1022, %v507
    %v1024 = vadd.f32 %v1023, %v508
    %v1025 = vadd.f32 %v1024, %v509
    %v1026 = vadd.f32 %v1025, %v510
    %v1027 = vadd.f32 %v1026, %v511
    %v1028 = vadd.f32 %v1027, %v512
    %v1029 = vadd.f32 %v1028, %v513
    %v1030 = vadd.f32 %v1029, %v514
    %v1031 = vadd.f32 %v1030, %v515
    %v1032 = vadd.f32 %v1031, %v516
    %v1033 = vadd.f32 %v1032, %v517
    %v1034 = vadd.f32 %v1033, %v518
    %v1035 = vadd.f32 %v1034, %v519
    %v1036 = vadd.f32 %v1035, %v520
    %v1037 = vadd.f32 %v1036, %v521
    %v1038 = vadd.f32 %v1037, %v522
    %v1039 = vadd.f32 %v1038, %v523
    %v1040 = vadd.f32 %v1039, %v524
    %v1041 = vadd.f32 %v1040, %v525
    %v1042 = vadd.f32 %v1041, %v526
    %v1043 = vadd.f32 %v1042, %v527
    %v1044 = vadd.f32 %v1043, %v528
    %v1045 = vadd.f32 %v1044, %v529
    %v1046 = vadd.f32 %v1045, %v530
    %v1047 = vadd.f32 %v1046, %v531
    %v1048 = vadd.f32 %v1047, %v532
    %v1049 = vadd.f32 %v1048, %v533
    %v1050 = vadd.f32 %v1049, %v534
    %v1051 = vadd.f32 %v1050, %v535
    %v1052 = vrot.slane %v1051, 4
    %v1053 = vadd.f32 %v1051, %v1052
    %v1054 = vrot.slane %v1053, 2
    %v1055 = vadd.f32 %v1053, %v1054
    %v1056 = vrot.slane %v1055, 1
    %v1057 = vadd.f32 %v1055, %v1056
    %1060 = vrot.lane.b32.xlu0 %v796, 64
    %v1061 = vpop.permute.xlu0 %1060
    %1062 = vrot.lane.b32.xlu0 %v1057, 64
    %v1063 = vpop.permute.xlu0 %1062
    %v1066 = vadd.f32 %v796, %v1061
    %v1067 = vadd.f32 %v1057, %v1063
    %v1068 = vmul.f32 %v1066, 0.00024414063
    %v1069 = vmul.f32 %v1067, 0.00024414063
    %v1072 = vrot.slane %v1069, 7
    %vm1073 = vcmask 1041409
    %v1074 = vsel %vm1073, %v1072, %v1068
    %1075 = vrot.lane.b32.xlu0 %v1074, 1
    %v1076 = vpop.permute.xlu0 %1075
    %vm1078 = vcmask 7168
    %v1079 = vsel %vm1078, 0.0, %v1076
    %s1080 = sld [smem:[#allocation2]]
    %v1081 = vstv %s1080
    %v1082 = vmul.f32 %v1081, %v1079
    %v1083 = vadd.f32 %v1082, 0.0
    %s1084 = sld [smem:[#allocation2 + $0x1]]
    %v1085 = vstv %s1084
    %v1086 = vmul.f32 %v1085, %v1068
    %v1087 = vmul.f32 %v1085, %v1069
    %v1090 = vrot.slane %v1087, 7
    %v1091 = vsel %vm1073, %v1090, %v1086
    %v1093 = vadd.f32 %v1083, %v1091
    %1094 = vrot.lane.b32.xlu0 %v1074, 127
    %v1095 = vpop.permute.xlu0 %1094
    %vm1097 = vcmask 515072
    %v1098 = vsel %vm1097, %v1095, 0.0
    %s1099 = sld [smem:[#allocation2 + $0x2]]
    %v1100 = vstv %s1099
    %v1101 = vmul.f32 %v1100, %v1098
    %v1102 = vadd.f32 %v1093, %v1101
    %v1103 = vxor.u32 %v1102, 2147483648
    %v1104 = vmul.f32 %v1103, 1.442695
    %v1105 = vpow.pop %v1104
    %v1106 = vadd.f32 %v1105, 1.0
    %v1107 = vrcp.pop %v1106
    %v1108 = vmul.f32 1.0, %v1107
    %1110 = vrot.lane.b32.xlu0 %v1108, 64
    %v1111 = vpop.permute.xlu0 %1110
    %vm1113 = vcmask 523264
    %v1114 = vsel %vm1113, %v1108, %v1111
    %v1117 = vunpack.c.l.s4 1966171168
    %v1118 = vunpack.c.0.s8 %v1117
    %v1119 = vlaneseq
    %v1120 = vshrl.u32 %v1119, 7
    %v1121 = vsub.s32 %v1118, %v1120
    %v1122 = vrot.slane %v1114, %v1121
    %v1123 = vcombine.high %v1122, %v1122
    %v1125 = vunpack.c.l.s4 1966171168
    %v1126 = vunpack.c.0.s8 %v1125
    %v1127 = vlaneseq
    %v1128 = vshrl.u32 %v1127, 7
    %v1129 = vsub.s32 %v1126, %v1128
    %v1130 = vrot.slane %v1122, %v1129
    %v1132 = vunpack.c.l.s4 1966171168
    %v1133 = vunpack.c.0.s8 %v1132
    %v1134 = vlaneseq
    %v1135 = vshrl.u32 %v1134, 7
    %v1136 = vsub.s32 %v1133, %v1135
    %v1137 = vrot.slane %v1123, %v1136
    %v1138 = vlaneseq
    %v1139 = vshrl.u32 %v1138, 7
    %v1140 = vsub.s32 0, %v1139
    %v1141 = vrot.slane %v1130, %v1140
    %v1142 = vlaneseq
    %v1143 = vshrl.u32 %v1142, 7
    %v1144 = vsub.s32 0, %v1143
    %v1145 = vrot.slane %v1137, %v1144
    %v1148 = vmul.f32 %v24, %v1141
    %v1149 = vmul.f32 %v25, %v1141
    %v1150 = vmul.f32 %v26, %v1141
    %v1151 = vmul.f32 %v27, %v1141
    %v1152 = vmul.f32 %v28, %v1141
    %v1153 = vmul.f32 %v29, %v1141
    %v1154 = vmul.f32 %v30, %v1141
    %v1155 = vmul.f32 %v31, %v1141
    %v1156 = vmul.f32 %v32, %v1141
    %v1157 = vmul.f32 %v33, %v1141
    %v1158 = vmul.f32 %v34, %v1141
    %v1159 = vmul.f32 %v35, %v1141
    %v1160 = vmul.f32 %v36, %v1141
    %v1161 = vmul.f32 %v37, %v1141
    %v1162 = vmul.f32 %v38, %v1141
    %v1163 = vmul.f32 %v39, %v1141
    %v1164 = vmul.f32 %v40, %v1141
    %v1165 = vmul.f32 %v41, %v1141
    %v1166 = vmul.f32 %v42, %v1141
    %v1167 = vmul.f32 %v43, %v1141
    %v1168 = vmul.f32 %v44, %v1141
    %v1169 = vmul.f32 %v45, %v1141
    %v1170 = vmul.f32 %v46, %v1141
    %v1171 = vmul.f32 %v47, %v1141
    %v1172 = vmul.f32 %v48, %v1141
    %v1173 = vmul.f32 %v49, %v1141
    %v1174 = vmul.f32 %v50, %v1141
    %v1175 = vmul.f32 %v51, %v1141
    %v1176 = vmul.f32 %v52, %v1141
    %v1177 = vmul.f32 %v53, %v1141
    %v1178 = vmul.f32 %v54, %v1141
    %v1179 = vmul.f32 %v55, %v1141
    %v1180 = vmul.f32 %v56, %v1141
    %v1181 = vmul.f32 %v57, %v1141
    %v1182 = vmul.f32 %v58, %v1141
    %v1183 = vmul.f32 %v59, %v1141
    %v1184 = vmul.f32 %v60, %v1141
    %v1185 = vmul.f32 %v61, %v1141
    %v1186 = vmul.f32 %v62, %v1141
    %v1187 = vmul.f32 %v63, %v1141
    %v1188 = vmul.f32 %v64, %v1141
    %v1189 = vmul.f32 %v65, %v1141
    %v1190 = vmul.f32 %v66, %v1141
    %v1191 = vmul.f32 %v67, %v1141
    %v1192 = vmul.f32 %v68, %v1141
    %v1193 = vmul.f32 %v69, %v1141
    %v1194 = vmul.f32 %v70, %v1141
    %v1195 = vmul.f32 %v71, %v1141
    %v1196 = vmul.f32 %v72, %v1141
    %v1197 = vmul.f32 %v73, %v1141
    %v1198 = vmul.f32 %v74, %v1141
    %v1199 = vmul.f32 %v75, %v1141
    %v1200 = vmul.f32 %v76, %v1141
    %v1201 = vmul.f32 %v77, %v1141
    %v1202 = vmul.f32 %v78, %v1141
    %v1203 = vmul.f32 %v79, %v1141
    %v1204 = vmul.f32 %v80, %v1141
    %v1205 = vmul.f32 %v81, %v1141
    %v1206 = vmul.f32 %v82, %v1141
    %v1207 = vmul.f32 %v83, %v1141
    %v1208 = vmul.f32 %v84, %v1141
    %v1209 = vmul.f32 %v85, %v1141
    %v1210 = vmul.f32 %v86, %v1141
    %v1211 = vmul.f32 %v87, %v1141
    %v1212 = vmul.f32 %v88, %v1141
    %v1213 = vmul.f32 %v89, %v1141
    %v1214 = vmul.f32 %v90, %v1141
    %v1215 = vmul.f32 %v91, %v1141
    %v1216 = vmul.f32 %v92, %v1141
    %v1217 = vmul.f32 %v93, %v1141
    %v1218 = vmul.f32 %v94, %v1141
    %v1219 = vmul.f32 %v95, %v1141
    %v1220 = vmul.f32 %v96, %v1141
    %v1221 = vmul.f32 %v97, %v1141
    %v1222 = vmul.f32 %v98, %v1141
    %v1223 = vmul.f32 %v99, %v1141
    %v1224 = vmul.f32 %v100, %v1141
    %v1225 = vmul.f32 %v101, %v1141
    %v1226 = vmul.f32 %v102, %v1141
    %v1227 = vmul.f32 %v103, %v1141
    %v1228 = vmul.f32 %v104, %v1141
    %v1229 = vmul.f32 %v105, %v1141
    %v1230 = vmul.f32 %v106, %v1141
    %v1231 = vmul.f32 %v107, %v1141
    %v1232 = vmul.f32 %v108, %v1141
    %v1233 = vmul.f32 %v109, %v1141
    %v1234 = vmul.f32 %v110, %v1141
    %v1235 = vmul.f32 %v111, %v1141
    %v1236 = vmul.f32 %v112, %v1141
    %v1237 = vmul.f32 %v113, %v1141
    %v1238 = vmul.f32 %v114, %v1141
    %v1239 = vmul.f32 %v115, %v1141
    %v1240 = vmul.f32 %v116, %v1141
    %v1241 = vmul.f32 %v117, %v1141
    %v1242 = vmul.f32 %v118, %v1141
    %v1243 = vmul.f32 %v119, %v1141
    %v1244 = vmul.f32 %v120, %v1141
    %v1245 = vmul.f32 %v121, %v1141
    %v1246 = vmul.f32 %v122, %v1141
    %v1247 = vmul.f32 %v123, %v1141
    %v1248 = vmul.f32 %v124, %v1141
    %v1249 = vmul.f32 %v125, %v1141
    %v1250 = vmul.f32 %v126, %v1141
    %v1251 = vmul.f32 %v127, %v1141
    %v1252 = vmul.f32 %v128, %v1141
    %v1253 = vmul.f32 %v129, %v1141
    %v1254 = vmul.f32 %v130, %v1141
    %v1255 = vmul.f32 %v131, %v1141
    %v1256 = vmul.f32 %v132, %v1141
    %v1257 = vmul.f32 %v133, %v1141
    %v1258 = vmul.f32 %v134, %v1141
    %v1259 = vmul.f32 %v135, %v1141
    %v1260 = vmul.f32 %v136, %v1141
    %v1261 = vmul.f32 %v137, %v1141
    %v1262 = vmul.f32 %v138, %v1141
    %v1263 = vmul.f32 %v139, %v1141
    %v1264 = vmul.f32 %v140, %v1141
    %v1265 = vmul.f32 %v141, %v1141
    %v1266 = vmul.f32 %v142, %v1141
    %v1267 = vmul.f32 %v143, %v1141
    %v1268 = vmul.f32 %v144, %v1141
    %v1269 = vmul.f32 %v145, %v1141
    %v1270 = vmul.f32 %v146, %v1141
    %v1271 = vmul.f32 %v147, %v1141
    %v1272 = vmul.f32 %v148, %v1141
    %v1273 = vmul.f32 %v149, %v1141
    %v1274 = vmul.f32 %v150, %v1141
    %v1275 = vmul.f32 %v151, %v1141
    %v1276 = vmul.f32 %v152, %v1141
    %v1277 = vmul.f32 %v153, %v1141
    %v1278 = vmul.f32 %v154, %v1141
    %v1279 = vmul.f32 %v155, %v1141
    %v1280 = vmul.f32 %v156, %v1141
    %v1281 = vmul.f32 %v157, %v1141
    %v1282 = vmul.f32 %v158, %v1141
    %v1283 = vmul.f32 %v159, %v1141
    %v1284 = vmul.f32 %v160, %v1141
    %v1285 = vmul.f32 %v161, %v1141
    %v1286 = vmul.f32 %v162, %v1141
    %v1287 = vmul.f32 %v163, %v1141
    %v1288 = vmul.f32 %v164, %v1141
    %v1289 = vmul.f32 %v165, %v1141
    %v1290 = vmul.f32 %v166, %v1141
    %v1291 = vmul.f32 %v167, %v1141
    %v1292 = vmul.f32 %v168, %v1141
    %v1293 = vmul.f32 %v169, %v1141
    %v1294 = vmul.f32 %v170, %v1141
    %v1295 = vmul.f32 %v171, %v1141
    %v1296 = vmul.f32 %v172, %v1141
    %v1297 = vmul.f32 %v173, %v1141
    %v1298 = vmul.f32 %v174, %v1141
    %v1299 = vmul.f32 %v175, %v1141
    %v1300 = vmul.f32 %v176, %v1141
    %v1301 = vmul.f32 %v177, %v1141
    %v1302 = vmul.f32 %v178, %v1141
    %v1303 = vmul.f32 %v179, %v1141
    %v1304 = vmul.f32 %v180, %v1141
    %v1305 = vmul.f32 %v181, %v1141
    %v1306 = vmul.f32 %v182, %v1141
    %v1307 = vmul.f32 %v183, %v1141
    %v1308 = vmul.f32 %v184, %v1141
    %v1309 = vmul.f32 %v185, %v1141
    %v1310 = vmul.f32 %v186, %v1141
    %v1311 = vmul.f32 %v187, %v1141
    %v1312 = vmul.f32 %v188, %v1141
    %v1313 = vmul.f32 %v189, %v1141
    %v1314 = vmul.f32 %v190, %v1141
    %v1315 = vmul.f32 %v191, %v1141
    %v1316 = vmul.f32 %v192, %v1141
    %v1317 = vmul.f32 %v193, %v1141
    %v1318 = vmul.f32 %v194, %v1141
    %v1319 = vmul.f32 %v195, %v1141
    %v1320 = vmul.f32 %v196, %v1141
    %v1321 = vmul.f32 %v197, %v1141
    %v1322 = vmul.f32 %v198, %v1141
    %v1323 = vmul.f32 %v199, %v1141
    %v1324 = vmul.f32 %v200, %v1141
    %v1325 = vmul.f32 %v201, %v1141
    %v1326 = vmul.f32 %v202, %v1141
    %v1327 = vmul.f32 %v203, %v1141
    %v1328 = vmul.f32 %v204, %v1141
    %v1329 = vmul.f32 %v205, %v1141
    %v1330 = vmul.f32 %v206, %v1141
    %v1331 = vmul.f32 %v207, %v1141
    %v1332 = vmul.f32 %v208, %v1141
    %v1333 = vmul.f32 %v209, %v1141
    %v1334 = vmul.f32 %v210, %v1141
    %v1335 = vmul.f32 %v211, %v1141
    %v1336 = vmul.f32 %v212, %v1141
    %v1337 = vmul.f32 %v213, %v1141
    %v1338 = vmul.f32 %v214, %v1141
    %v1339 = vmul.f32 %v215, %v1141
    %v1340 = vmul.f32 %v216, %v1141
    %v1341 = vmul.f32 %v217, %v1141
    %v1342 = vmul.f32 %v218, %v1141
    %v1343 = vmul.f32 %v219, %v1141
    %v1344 = vmul.f32 %v220, %v1141
    %v1345 = vmul.f32 %v221, %v1141
    %v1346 = vmul.f32 %v222, %v1141
    %v1347 = vmul.f32 %v223, %v1141
    %v1348 = vmul.f32 %v224, %v1141
    %v1349 = vmul.f32 %v225, %v1141
    %v1350 = vmul.f32 %v226, %v1141
    %v1351 = vmul.f32 %v227, %v1141
    %v1352 = vmul.f32 %v228, %v1141
    %v1353 = vmul.f32 %v229, %v1141
    %v1354 = vmul.f32 %v230, %v1141
    %v1355 = vmul.f32 %v231, %v1141
    %v1356 = vmul.f32 %v232, %v1141
    %v1357 = vmul.f32 %v233, %v1141
    %v1358 = vmul.f32 %v234, %v1141
    %v1359 = vmul.f32 %v235, %v1141
    %v1360 = vmul.f32 %v236, %v1141
    %v1361 = vmul.f32 %v237, %v1141
    %v1362 = vmul.f32 %v238, %v1141
    %v1363 = vmul.f32 %v239, %v1141
    %v1364 = vmul.f32 %v240, %v1141
    %v1365 = vmul.f32 %v241, %v1141
    %v1366 = vmul.f32 %v242, %v1141
    %v1367 = vmul.f32 %v243, %v1141
    %v1368 = vmul.f32 %v244, %v1141
    %v1369 = vmul.f32 %v245, %v1141
    %v1370 = vmul.f32 %v246, %v1141
    %v1371 = vmul.f32 %v247, %v1141
    %v1372 = vmul.f32 %v248, %v1141
    %v1373 = vmul.f32 %v249, %v1141
    %v1374 = vmul.f32 %v250, %v1141
    %v1375 = vmul.f32 %v251, %v1141
    %v1376 = vmul.f32 %v252, %v1141
    %v1377 = vmul.f32 %v253, %v1141
    %v1378 = vmul.f32 %v254, %v1141
    %v1379 = vmul.f32 %v255, %v1141
    %v1380 = vmul.f32 %v256, %v1141
    %v1381 = vmul.f32 %v257, %v1141
    %v1382 = vmul.f32 %v258, %v1141
    %v1383 = vmul.f32 %v259, %v1141
    %v1384 = vmul.f32 %v260, %v1141
    %v1385 = vmul.f32 %v261, %v1141
    %v1386 = vmul.f32 %v262, %v1141
    %v1387 = vmul.f32 %v263, %v1141
    %v1388 = vmul.f32 %v264, %v1141
    %v1389 = vmul.f32 %v265, %v1141
    %v1390 = vmul.f32 %v266, %v1141
    %v1391 = vmul.f32 %v267, %v1141
    %v1392 = vmul.f32 %v268, %v1141
    %v1393 = vmul.f32 %v269, %v1141
    %v1394 = vmul.f32 %v270, %v1141
    %v1395 = vmul.f32 %v271, %v1141
    %v1396 = vmul.f32 %v272, %v1141
    %v1397 = vmul.f32 %v273, %v1141
    %v1398 = vmul.f32 %v274, %v1141
    %v1399 = vmul.f32 %v275, %v1141
    %v1400 = vmul.f32 %v276, %v1141
    %v1401 = vmul.f32 %v277, %v1141
    %v1402 = vmul.f32 %v278, %v1141
    %v1403 = vmul.f32 %v279, %v1141
    %v1404 = vmul.f32 %v280, %v1145
    %v1405 = vmul.f32 %v281, %v1145
    %v1406 = vmul.f32 %v282, %v1145
    %v1407 = vmul.f32 %v283, %v1145
    %v1408 = vmul.f32 %v284, %v1145
    %v1409 = vmul.f32 %v285, %v1145
    %v1410 = vmul.f32 %v286, %v1145
    %v1411 = vmul.f32 %v287, %v1145
    %v1412 = vmul.f32 %v288, %v1145
    %v1413 = vmul.f32 %v289, %v1145
    %v1414 = vmul.f32 %v290, %v1145
    %v1415 = vmul.f32 %v291, %v1145
    %v1416 = vmul.f32 %v292, %v1145
    %v1417 = vmul.f32 %v293, %v1145
    %v1418 = vmul.f32 %v294, %v1145
    %v1419 = vmul.f32 %v295, %v1145
    %v1420 = vmul.f32 %v296, %v1145
    %v1421 = vmul.f32 %v297, %v1145
    %v1422 = vmul.f32 %v298, %v1145
    %v1423 = vmul.f32 %v299, %v1145
    %v1424 = vmul.f32 %v300, %v1145
    %v1425 = vmul.f32 %v301, %v1145
    %v1426 = vmul.f32 %v302, %v1145
    %v1427 = vmul.f32 %v303, %v1145
    %v1428 = vmul.f32 %v304, %v1145
    %v1429 = vmul.f32 %v305, %v1145
    %v1430 = vmul.f32 %v306, %v1145
    %v1431 = vmul.f32 %v307, %v1145
    %v1432 = vmul.f32 %v308, %v1145
    %v1433 = vmul.f32 %v309, %v1145
    %v1434 = vmul.f32 %v310, %v1145
    %v1435 = vmul.f32 %v311, %v1145
    %v1436 = vmul.f32 %v312, %v1145
    %v1437 = vmul.f32 %v313, %v1145
    %v1438 = vmul.f32 %v314, %v1145
    %v1439 = vmul.f32 %v315, %v1145
    %v1440 = vmul.f32 %v316, %v1145
    %v1441 = vmul.f32 %v317, %v1145
    %v1442 = vmul.f32 %v318, %v1145
    %v1443 = vmul.f32 %v319, %v1145
    %v1444 = vmul.f32 %v320, %v1145
    %v1445 = vmul.f32 %v321, %v1145
    %v1446 = vmul.f32 %v322, %v1145
    %v1447 = vmul.f32 %v323, %v1145
    %v1448 = vmul.f32 %v324, %v1145
    %v1449 = vmul.f32 %v325, %v1145
    %v1450 = vmul.f32 %v326, %v1145
    %v1451 = vmul.f32 %v327, %v1145
    %v1452 = vmul.f32 %v328, %v1145
    %v1453 = vmul.f32 %v329, %v1145
    %v1454 = vmul.f32 %v330, %v1145
    %v1455 = vmul.f32 %v331, %v1145
    %v1456 = vmul.f32 %v332, %v1145
    %v1457 = vmul.f32 %v333, %v1145
    %v1458 = vmul.f32 %v334, %v1145
    %v1459 = vmul.f32 %v335, %v1145
    %v1460 = vmul.f32 %v336, %v1145
    %v1461 = vmul.f32 %v337, %v1145
    %v1462 = vmul.f32 %v338, %v1145
    %v1463 = vmul.f32 %v339, %v1145
    %v1464 = vmul.f32 %v340, %v1145
    %v1465 = vmul.f32 %v341, %v1145
    %v1466 = vmul.f32 %v342, %v1145
    %v1467 = vmul.f32 %v343, %v1145
    %v1468 = vmul.f32 %v344, %v1145
    %v1469 = vmul.f32 %v345, %v1145
    %v1470 = vmul.f32 %v346, %v1145
    %v1471 = vmul.f32 %v347, %v1145
    %v1472 = vmul.f32 %v348, %v1145
    %v1473 = vmul.f32 %v349, %v1145
    %v1474 = vmul.f32 %v350, %v1145
    %v1475 = vmul.f32 %v351, %v1145
    %v1476 = vmul.f32 %v352, %v1145
    %v1477 = vmul.f32 %v353, %v1145
    %v1478 = vmul.f32 %v354, %v1145
    %v1479 = vmul.f32 %v355, %v1145
    %v1480 = vmul.f32 %v356, %v1145
    %v1481 = vmul.f32 %v357, %v1145
    %v1482 = vmul.f32 %v358, %v1145
    %v1483 = vmul.f32 %v359, %v1145
    %v1484 = vmul.f32 %v360, %v1145
    %v1485 = vmul.f32 %v361, %v1145
    %v1486 = vmul.f32 %v362, %v1145
    %v1487 = vmul.f32 %v363, %v1145
    %v1488 = vmul.f32 %v364, %v1145
    %v1489 = vmul.f32 %v365, %v1145
    %v1490 = vmul.f32 %v366, %v1145
    %v1491 = vmul.f32 %v367, %v1145
    %v1492 = vmul.f32 %v368, %v1145
    %v1493 = vmul.f32 %v369, %v1145
    %v1494 = vmul.f32 %v370, %v1145
    %v1495 = vmul.f32 %v371, %v1145
    %v1496 = vmul.f32 %v372, %v1145
    %v1497 = vmul.f32 %v373, %v1145
    %v1498 = vmul.f32 %v374, %v1145
    %v1499 = vmul.f32 %v375, %v1145
    %v1500 = vmul.f32 %v376, %v1145
    %v1501 = vmul.f32 %v377, %v1145
    %v1502 = vmul.f32 %v378, %v1145
    %v1503 = vmul.f32 %v379, %v1145
    %v1504 = vmul.f32 %v380, %v1145
    %v1505 = vmul.f32 %v381, %v1145
    %v1506 = vmul.f32 %v382, %v1145
    %v1507 = vmul.f32 %v383, %v1145
    %v1508 = vmul.f32 %v384, %v1145
    %v1509 = vmul.f32 %v385, %v1145
    %v1510 = vmul.f32 %v386, %v1145
    %v1511 = vmul.f32 %v387, %v1145
    %v1512 = vmul.f32 %v388, %v1145
    %v1513 = vmul.f32 %v389, %v1145
    %v1514 = vmul.f32 %v390, %v1145
    %v1515 = vmul.f32 %v391, %v1145
    %v1516 = vmul.f32 %v392, %v1145
    %v1517 = vmul.f32 %v393, %v1145
    %v1518 = vmul.f32 %v394, %v1145
    %v1519 = vmul.f32 %v395, %v1145
    %v1520 = vmul.f32 %v396, %v1145
    %v1521 = vmul.f32 %v397, %v1145
    %v1522 = vmul.f32 %v398, %v1145
    %v1523 = vmul.f32 %v399, %v1145
    %v1524 = vmul.f32 %v400, %v1145
    %v1525 = vmul.f32 %v401, %v1145
    %v1526 = vmul.f32 %v402, %v1145
    %v1527 = vmul.f32 %v403, %v1145
    %v1528 = vmul.f32 %v404, %v1145
    %v1529 = vmul.f32 %v405, %v1145
    %v1530 = vmul.f32 %v406, %v1145
    %v1531 = vmul.f32 %v407, %v1145
    %v1532 = vmul.f32 %v408, %v1145
    %v1533 = vmul.f32 %v409, %v1145
    %v1534 = vmul.f32 %v410, %v1145
    %v1535 = vmul.f32 %v411, %v1145
    %v1536 = vmul.f32 %v412, %v1145
    %v1537 = vmul.f32 %v413, %v1145
    %v1538 = vmul.f32 %v414, %v1145
    %v1539 = vmul.f32 %v415, %v1145
    %v1540 = vmul.f32 %v416, %v1145
    %v1541 = vmul.f32 %v417, %v1145
    %v1542 = vmul.f32 %v418, %v1145
    %v1543 = vmul.f32 %v419, %v1145
    %v1544 = vmul.f32 %v420, %v1145
    %v1545 = vmul.f32 %v421, %v1145
    %v1546 = vmul.f32 %v422, %v1145
    %v1547 = vmul.f32 %v423, %v1145
    %v1548 = vmul.f32 %v424, %v1145
    %v1549 = vmul.f32 %v425, %v1145
    %v1550 = vmul.f32 %v426, %v1145
    %v1551 = vmul.f32 %v427, %v1145
    %v1552 = vmul.f32 %v428, %v1145
    %v1553 = vmul.f32 %v429, %v1145
    %v1554 = vmul.f32 %v430, %v1145
    %v1555 = vmul.f32 %v431, %v1145
    %v1556 = vmul.f32 %v432, %v1145
    %v1557 = vmul.f32 %v433, %v1145
    %v1558 = vmul.f32 %v434, %v1145
    %v1559 = vmul.f32 %v435, %v1145
    %v1560 = vmul.f32 %v436, %v1145
    %v1561 = vmul.f32 %v437, %v1145
    %v1562 = vmul.f32 %v438, %v1145
    %v1563 = vmul.f32 %v439, %v1145
    %v1564 = vmul.f32 %v440, %v1145
    %v1565 = vmul.f32 %v441, %v1145
    %v1566 = vmul.f32 %v442, %v1145
    %v1567 = vmul.f32 %v443, %v1145
    %v1568 = vmul.f32 %v444, %v1145
    %v1569 = vmul.f32 %v445, %v1145
    %v1570 = vmul.f32 %v446, %v1145
    %v1571 = vmul.f32 %v447, %v1145
    %v1572 = vmul.f32 %v448, %v1145
    %v1573 = vmul.f32 %v449, %v1145
    %v1574 = vmul.f32 %v450, %v1145
    %v1575 = vmul.f32 %v451, %v1145
    %v1576 = vmul.f32 %v452, %v1145
    %v1577 = vmul.f32 %v453, %v1145
    %v1578 = vmul.f32 %v454, %v1145
    %v1579 = vmul.f32 %v455, %v1145
    %v1580 = vmul.f32 %v456, %v1145
    %v1581 = vmul.f32 %v457, %v1145
    %v1582 = vmul.f32 %v458, %v1145
    %v1583 = vmul.f32 %v459, %v1145
    %v1584 = vmul.f32 %v460, %v1145
    %v1585 = vmul.f32 %v461, %v1145
    %v1586 = vmul.f32 %v462, %v1145
    %v1587 = vmul.f32 %v463, %v1145
    %v1588 = vmul.f32 %v464, %v1145
    %v1589 = vmul.f32 %v465, %v1145
    %v1590 = vmul.f32 %v466, %v1145
    %v1591 = vmul.f32 %v467, %v1145
    %v1592 = vmul.f32 %v468, %v1145
    %v1593 = vmul.f32 %v469, %v1145
    %v1594 = vmul.f32 %v470, %v1145
    %v1595 = vmul.f32 %v471, %v1145
    %v1596 = vmul.f32 %v472, %v1145
    %v1597 = vmul.f32 %v473, %v1145
    %v1598 = vmul.f32 %v474, %v1145
    %v1599 = vmul.f32 %v475, %v1145
    %v1600 = vmul.f32 %v476, %v1145
    %v1601 = vmul.f32 %v477, %v1145
    %v1602 = vmul.f32 %v478, %v1145
    %v1603 = vmul.f32 %v479, %v1145
    %v1604 = vmul.f32 %v480, %v1145
    %v1605 = vmul.f32 %v481, %v1145
    %v1606 = vmul.f32 %v482, %v1145
    %v1607 = vmul.f32 %v483, %v1145
    %v1608 = vmul.f32 %v484, %v1145
    %v1609 = vmul.f32 %v485, %v1145
    %v1610 = vmul.f32 %v486, %v1145
    %v1611 = vmul.f32 %v487, %v1145
    %v1612 = vmul.f32 %v488, %v1145
    %v1613 = vmul.f32 %v489, %v1145
    %v1614 = vmul.f32 %v490, %v1145
    %v1615 = vmul.f32 %v491, %v1145
    %v1616 = vmul.f32 %v492, %v1145
    %v1617 = vmul.f32 %v493, %v1145
    %v1618 = vmul.f32 %v494, %v1145
    %v1619 = vmul.f32 %v495, %v1145
    %v1620 = vmul.f32 %v496, %v1145
    %v1621 = vmul.f32 %v497, %v1145
    %v1622 = vmul.f32 %v498, %v1145
    %v1623 = vmul.f32 %v499, %v1145
    %v1624 = vmul.f32 %v500, %v1145
    %v1625 = vmul.f32 %v501, %v1145
    %v1626 = vmul.f32 %v502, %v1145
    %v1627 = vmul.f32 %v503, %v1145
    %v1628 = vmul.f32 %v504, %v1145
    %v1629 = vmul.f32 %v505, %v1145
    %v1630 = vmul.f32 %v506, %v1145
    %v1631 = vmul.f32 %v507, %v1145
    %v1632 = vmul.f32 %v508, %v1145
    %v1633 = vmul.f32 %v509, %v1145
    %v1634 = vmul.f32 %v510, %v1145
    %v1635 = vmul.f32 %v511, %v1145
    %v1636 = vmul.f32 %v512, %v1145
    %v1637 = vmul.f32 %v513, %v1145
    %v1638 = vmul.f32 %v514, %v1145
    %v1639 = vmul.f32 %v515, %v1145
    %v1640 = vmul.f32 %v516, %v1145
    %v1641 = vmul.f32 %v517, %v1145
    %v1642 = vmul.f32 %v518, %v1145
    %v1643 = vmul.f32 %v519, %v1145
    %v1644 = vmul.f32 %v520, %v1145
    %v1645 = vmul.f32 %v521, %v1145
    %v1646 = vmul.f32 %v522, %v1145
    %v1647 = vmul.f32 %v523, %v1145
    %v1648 = vmul.f32 %v524, %v1145
    %v1649 = vmul.f32 %v525, %v1145
    %v1650 = vmul.f32 %v526, %v1145
    %v1651 = vmul.f32 %v527, %v1145
    %v1652 = vmul.f32 %v528, %v1145
    %v1653 = vmul.f32 %v529, %v1145
    %v1654 = vmul.f32 %v530, %v1145
    %v1655 = vmul.f32 %v531, %v1145
    %v1656 = vmul.f32 %v532, %v1145
    %v1657 = vmul.f32 %v533, %v1145
    %v1658 = vmul.f32 %v534, %v1145
    %v1659 = vmul.f32 %v535, %v1145
    %1660 = vst [vmem:[%s2] sm:$0xff] %v1148
    %1661 = vst [vmem:[%s2 + $0x8] sm:$0xff] %v1149
    %1662 = vst [vmem:[%s2 + $0x10] sm:$0xff] %v1150
    %1663 = vst [vmem:[%s2 + $0x18] sm:$0xff] %v1151
    %1664 = vst [vmem:[%s2 + $0x20] sm:$0xff] %v1152
    %1665 = vst [vmem:[%s2 + $0x28] sm:$0xff] %v1153
    %1666 = vst [vmem:[%s2 + $0x30] sm:$0xff] %v1154
    %1667 = vst [vmem:[%s2 + $0x38] sm:$0xff] %v1155
    %1668 = vst [vmem:[%s2 + $0x40] sm:$0xff] %v1156
    %1669 = vst [vmem:[%s2 + $0x48] sm:$0xff] %v1157
    %1670 = vst [vmem:[%s2 + $0x50] sm:$0xff] %v1158
    %1671 = vst [vmem:[%s2 + $0x58] sm:$0xff] %v1159
    %1672 = vst [vmem:[%s2 + $0x60] sm:$0xff] %v1160
    %1673 = vst [vmem:[%s2 + $0x68] sm:$0xff] %v1161
    %1674 = vst [vmem:[%s2 + $0x70] sm:$0xff] %v1162
    %1675 = vst [vmem:[%s2 + $0x78] sm:$0xff] %v1163
    %1676 = vst [vmem:[%s2 + $0x80] sm:$0xff] %v1164
    %1677 = vst [vmem:[%s2 + $0x88] sm:$0xff] %v1165
    %1678 = vst [vmem:[%s2 + $0x90] sm:$0xff] %v1166
    %1679 = vst [vmem:[%s2 + $0x98] sm:$0xff] %v1167
    %1680 = vst [vmem:[%s2 + $0xa0] sm:$0xff] %v1168
    %1681 = vst [vmem:[%s2 + $0xa8] sm:$0xff] %v1169
    %1682 = vst [vmem:[%s2 + $0xb0] sm:$0xff] %v1170
    %1683 = vst [vmem:[%s2 + $0xb8] sm:$0xff] %v1171
    %1684 = vst [vmem:[%s2 + $0xc0] sm:$0xff] %v1172
    %1685 = vst [vmem:[%s2 + $0xc8] sm:$0xff] %v1173
    %1686 = vst [vmem:[%s2 + $0xd0] sm:$0xff] %v1174
    %1687 = vst [vmem:[%s2 + $0xd8] sm:$0xff] %v1175
    %1688 = vst [vmem:[%s2 + $0xe0] sm:$0xff] %v1176
    %1689 = vst [vmem:[%s2 + $0xe8] sm:$0xff] %v1177
    %1690 = vst [vmem:[%s2 + $0xf0] sm:$0xff] %v1178
    %1691 = vst [vmem:[%s2 + $0xf8] sm:$0xff] %v1179
    %1692 = vst [vmem:[%s2 + $0x100] sm:$0xff] %v1180
    %1693 = vst [vmem:[%s2 + $0x108] sm:$0xff] %v1181
    %1694 = vst [vmem:[%s2 + $0x110] sm:$0xff] %v1182
    %1695 = vst [vmem:[%s2 + $0x118] sm:$0xff] %v1183
    %1696 = vst [vmem:[%s2 + $0x120] sm:$0xff] %v1184
    %1697 = vst [vmem:[%s2 + $0x128] sm:$0xff] %v1185
    %1698 = vst [vmem:[%s2 + $0x130] sm:$0xff] %v1186
    %1699 = vst [vmem:[%s2 + $0x138] sm:$0xff] %v1187
    %1700 = vst [vmem:[%s2 + $0x140] sm:$0xff] %v1188
    %1701 = vst [vmem:[%s2 + $0x148] sm:$0xff] %v1189
    %1702 = vst [vmem:[%s2 + $0x150] sm:$0xff] %v1190
    %1703 = vst [vmem:[%s2 + $0x158] sm:$0xff] %v1191
    %1704 = vst [vmem:[%s2 + $0x160] sm:$0xff] %v1192
    %1705 = vst [vmem:[%s2 + $0x168] sm:$0xff] %v1193
    %1706 = vst [vmem:[%s2 + $0x170] sm:$0xff] %v1194
    %1707 = vst [vmem:[%s2 + $0x178] sm:$0xff] %v1195
    %1708 = vst [vmem:[%s2 + $0x180] sm:$0xff] %v1196
    %1709 = vst [vmem:[%s2 + $0x188] sm:$0xff] %v1197
    %1710 = vst [vmem:[%s2 + $0x190] sm:$0xff] %v1198
    %1711 = vst [vmem:[%s2 + $0x198] sm:$0xff] %v1199
    %1712 = vst [vmem:[%s2 + $0x1a0] sm:$0xff] %v1200
    %1713 = vst [vmem:[%s2 + $0x1a8] sm:$0xff] %v1201
    %1714 = vst [vmem:[%s2 + $0x1b0] sm:$0xff] %v1202
    %1715 = vst [vmem:[%s2 + $0x1b8] sm:$0xff] %v1203
    %1716 = vst [vmem:[%s2 + $0x1c0] sm:$0xff] %v1204
    %1717 = vst [vmem:[%s2 + $0x1c8] sm:$0xff] %v1205
    %1718 = vst [vmem:[%s2 + $0x1d0] sm:$0xff] %v1206
    %1719 = vst [vmem:[%s2 + $0x1d8] sm:$0xff] %v1207
    %1720 = vst [vmem:[%s2 + $0x1e0] sm:$0xff] %v1208
    %1721 = vst [vmem:[%s2 + $0x1e8] sm:$0xff] %v1209
    %1722 = vst [vmem:[%s2 + $0x1f0] sm:$0xff] %v1210
    %1723 = vst [vmem:[%s2 + $0x1f8] sm:$0xff] %v1211
    %1724 = vst [vmem:[%s2 + $0x200] sm:$0xff] %v1212
    %1725 = vst [vmem:[%s2 + $0x208] sm:$0xff] %v1213
    %1726 = vst [vmem:[%s2 + $0x210] sm:$0xff] %v1214
    %1727 = vst [vmem:[%s2 + $0x218] sm:$0xff] %v1215
    %1728 = vst [vmem:[%s2 + $0x220] sm:$0xff] %v1216
    %1729 = vst [vmem:[%s2 + $0x228] sm:$0xff] %v1217
    %1730 = vst [vmem:[%s2 + $0x230] sm:$0xff] %v1218
    %1731 = vst [vmem:[%s2 + $0x238] sm:$0xff] %v1219
    %1732 = vst [vmem:[%s2 + $0x240] sm:$0xff] %v1220
    %1733 = vst [vmem:[%s2 + $0x248] sm:$0xff] %v1221
    %1734 = vst [vmem:[%s2 + $0x250] sm:$0xff] %v1222
    %1735 = vst [vmem:[%s2 + $0x258] sm:$0xff] %v1223
    %1736 = vst [vmem:[%s2 + $0x260] sm:$0xff] %v1224
    %1737 = vst [vmem:[%s2 + $0x268] sm:$0xff] %v1225
    %1738 = vst [vmem:[%s2 + $0x270] sm:$0xff] %v1226
    %1739 = vst [vmem:[%s2 + $0x278] sm:$0xff] %v1227
    %1740 = vst [vmem:[%s2 + $0x280] sm:$0xff] %v1228
    %1741 = vst [vmem:[%s2 + $0x288] sm:$0xff] %v1229
    %1742 = vst [vmem:[%s2 + $0x290] sm:$0xff] %v1230
    %1743 = vst [vmem:[%s2 + $0x298] sm:$0xff] %v1231
    %1744 = vst [vmem:[%s2 + $0x2a0] sm:$0xff] %v1232
    %1745 = vst [vmem:[%s2 + $0x2a8] sm:$0xff] %v1233
    %1746 = vst [vmem:[%s2 + $0x2b0] sm:$0xff] %v1234
    %1747 = vst [vmem:[%s2 + $0x2b8] sm:$0xff] %v1235
    %1748 = vst [vmem:[%s2 + $0x2c0] sm:$0xff] %v1236
    %1749 = vst [vmem:[%s2 + $0x2c8] sm:$0xff] %v1237
    %1750 = vst [vmem:[%s2 + $0x2d0] sm:$0xff] %v1238
    %1751 = vst [vmem:[%s2 + $0x2d8] sm:$0xff] %v1239
    %1752 = vst [vmem:[%s2 + $0x2e0] sm:$0xff] %v1240
    %1753 = vst [vmem:[%s2 + $0x2e8] sm:$0xff] %v1241
    %1754 = vst [vmem:[%s2 + $0x2f0] sm:$0xff] %v1242
    %1755 = vst [vmem:[%s2 + $0x2f8] sm:$0xff] %v1243
    %1756 = vst [vmem:[%s2 + $0x300] sm:$0xff] %v1244
    %1757 = vst [vmem:[%s2 + $0x308] sm:$0xff] %v1245
    %1758 = vst [vmem:[%s2 + $0x310] sm:$0xff] %v1246
    %1759 = vst [vmem:[%s2 + $0x318] sm:$0xff] %v1247
    %1760 = vst [vmem:[%s2 + $0x320] sm:$0xff] %v1248
    %1761 = vst [vmem:[%s2 + $0x328] sm:$0xff] %v1249
    %1762 = vst [vmem:[%s2 + $0x330] sm:$0xff] %v1250
    %1763 = vst [vmem:[%s2 + $0x338] sm:$0xff] %v1251
    %1764 = vst [vmem:[%s2 + $0x340] sm:$0xff] %v1252
    %1765 = vst [vmem:[%s2 + $0x348] sm:$0xff] %v1253
    %1766 = vst [vmem:[%s2 + $0x350] sm:$0xff] %v1254
    %1767 = vst [vmem:[%s2 + $0x358] sm:$0xff] %v1255
    %1768 = vst [vmem:[%s2 + $0x360] sm:$0xff] %v1256
    %1769 = vst [vmem:[%s2 + $0x368] sm:$0xff] %v1257
    %1770 = vst [vmem:[%s2 + $0x370] sm:$0xff] %v1258
    %1771 = vst [vmem:[%s2 + $0x378] sm:$0xff] %v1259
    %1772 = vst [vmem:[%s2 + $0x380] sm:$0xff] %v1260
    %1773 = vst [vmem:[%s2 + $0x388] sm:$0xff] %v1261
    %1774 = vst [vmem:[%s2 + $0x390] sm:$0xff] %v1262
    %1775 = vst [vmem:[%s2 + $0x398] sm:$0xff] %v1263
    %1776 = vst [vmem:[%s2 + $0x3a0] sm:$0xff] %v1264
    %1777 = vst [vmem:[%s2 + $0x3a8] sm:$0xff] %v1265
    %1778 = vst [vmem:[%s2 + $0x3b0] sm:$0xff] %v1266
    %1779 = vst [vmem:[%s2 + $0x3b8] sm:$0xff] %v1267
    %1780 = vst [vmem:[%s2 + $0x3c0] sm:$0xff] %v1268
    %1781 = vst [vmem:[%s2 + $0x3c8] sm:$0xff] %v1269
    %1782 = vst [vmem:[%s2 + $0x3d0] sm:$0xff] %v1270
    %1783 = vst [vmem:[%s2 + $0x3d8] sm:$0xff] %v1271
    %1784 = vst [vmem:[%s2 + $0x3e0] sm:$0xff] %v1272
    %1785 = vst [vmem:[%s2 + $0x3e8] sm:$0xff] %v1273
    %1786 = vst [vmem:[%s2 + $0x3f0] sm:$0xff] %v1274
    %1787 = vst [vmem:[%s2 + $0x3f8] sm:$0xff] %v1275
    %1788 = vst [vmem:[%s2 + $0x400] sm:$0xff] %v1276
    %1789 = vst [vmem:[%s2 + $0x408] sm:$0xff] %v1277
    %1790 = vst [vmem:[%s2 + $0x410] sm:$0xff] %v1278
    %1791 = vst [vmem:[%s2 + $0x418] sm:$0xff] %v1279
    %1792 = vst [vmem:[%s2 + $0x420] sm:$0xff] %v1280
    %1793 = vst [vmem:[%s2 + $0x428] sm:$0xff] %v1281
    %1794 = vst [vmem:[%s2 + $0x430] sm:$0xff] %v1282
    %1795 = vst [vmem:[%s2 + $0x438] sm:$0xff] %v1283
    %1796 = vst [vmem:[%s2 + $0x440] sm:$0xff] %v1284
    %1797 = vst [vmem:[%s2 + $0x448] sm:$0xff] %v1285
    %1798 = vst [vmem:[%s2 + $0x450] sm:$0xff] %v1286
    %1799 = vst [vmem:[%s2 + $0x458] sm:$0xff] %v1287
    %1800 = vst [vmem:[%s2 + $0x460] sm:$0xff] %v1288
    %1801 = vst [vmem:[%s2 + $0x468] sm:$0xff] %v1289
    %1802 = vst [vmem:[%s2 + $0x470] sm:$0xff] %v1290
    %1803 = vst [vmem:[%s2 + $0x478] sm:$0xff] %v1291
    %1804 = vst [vmem:[%s2 + $0x480] sm:$0xff] %v1292
    %1805 = vst [vmem:[%s2 + $0x488] sm:$0xff] %v1293
    %1806 = vst [vmem:[%s2 + $0x490] sm:$0xff] %v1294
    %1807 = vst [vmem:[%s2 + $0x498] sm:$0xff] %v1295
    %1808 = vst [vmem:[%s2 + $0x4a0] sm:$0xff] %v1296
    %1809 = vst [vmem:[%s2 + $0x4a8] sm:$0xff] %v1297
    %1810 = vst [vmem:[%s2 + $0x4b0] sm:$0xff] %v1298
    %1811 = vst [vmem:[%s2 + $0x4b8] sm:$0xff] %v1299
    %1812 = vst [vmem:[%s2 + $0x4c0] sm:$0xff] %v1300
    %1813 = vst [vmem:[%s2 + $0x4c8] sm:$0xff] %v1301
    %1814 = vst [vmem:[%s2 + $0x4d0] sm:$0xff] %v1302
    %1815 = vst [vmem:[%s2 + $0x4d8] sm:$0xff] %v1303
    %1816 = vst [vmem:[%s2 + $0x4e0] sm:$0xff] %v1304
    %1817 = vst [vmem:[%s2 + $0x4e8] sm:$0xff] %v1305
    %1818 = vst [vmem:[%s2 + $0x4f0] sm:$0xff] %v1306
    %1819 = vst [vmem:[%s2 + $0x4f8] sm:$0xff] %v1307
    %1820 = vst [vmem:[%s2 + $0x500] sm:$0xff] %v1308
    %1821 = vst [vmem:[%s2 + $0x508] sm:$0xff] %v1309
    %1822 = vst [vmem:[%s2 + $0x510] sm:$0xff] %v1310
    %1823 = vst [vmem:[%s2 + $0x518] sm:$0xff] %v1311
    %1824 = vst [vmem:[%s2 + $0x520] sm:$0xff] %v1312
    %1825 = vst [vmem:[%s2 + $0x528] sm:$0xff] %v1313
    %1826 = vst [vmem:[%s2 + $0x530] sm:$0xff] %v1314
    %1827 = vst [vmem:[%s2 + $0x538] sm:$0xff] %v1315
    %1828 = vst [vmem:[%s2 + $0x540] sm:$0xff] %v1316
    %1829 = vst [vmem:[%s2 + $0x548] sm:$0xff] %v1317
    %1830 = vst [vmem:[%s2 + $0x550] sm:$0xff] %v1318
    %1831 = vst [vmem:[%s2 + $0x558] sm:$0xff] %v1319
    %1832 = vst [vmem:[%s2 + $0x560] sm:$0xff] %v1320
    %1833 = vst [vmem:[%s2 + $0x568] sm:$0xff] %v1321
    %1834 = vst [vmem:[%s2 + $0x570] sm:$0xff] %v1322
    %1835 = vst [vmem:[%s2 + $0x578] sm:$0xff] %v1323
    %1836 = vst [vmem:[%s2 + $0x580] sm:$0xff] %v1324
    %1837 = vst [vmem:[%s2 + $0x588] sm:$0xff] %v1325
    %1838 = vst [vmem:[%s2 + $0x590] sm:$0xff] %v1326
    %1839 = vst [vmem:[%s2 + $0x598] sm:$0xff] %v1327
    %1840 = vst [vmem:[%s2 + $0x5a0] sm:$0xff] %v1328
    %1841 = vst [vmem:[%s2 + $0x5a8] sm:$0xff] %v1329
    %1842 = vst [vmem:[%s2 + $0x5b0] sm:$0xff] %v1330
    %1843 = vst [vmem:[%s2 + $0x5b8] sm:$0xff] %v1331
    %1844 = vst [vmem:[%s2 + $0x5c0] sm:$0xff] %v1332
    %1845 = vst [vmem:[%s2 + $0x5c8] sm:$0xff] %v1333
    %1846 = vst [vmem:[%s2 + $0x5d0] sm:$0xff] %v1334
    %1847 = vst [vmem:[%s2 + $0x5d8] sm:$0xff] %v1335
    %1848 = vst [vmem:[%s2 + $0x5e0] sm:$0xff] %v1336
    %1849 = vst [vmem:[%s2 + $0x5e8] sm:$0xff] %v1337
    %1850 = vst [vmem:[%s2 + $0x5f0] sm:$0xff] %v1338
    %1851 = vst [vmem:[%s2 + $0x5f8] sm:$0xff] %v1339
    %1852 = vst [vmem:[%s2 + $0x600] sm:$0xff] %v1340
    %1853 = vst [vmem:[%s2 + $0x608] sm:$0xff] %v1341
    %1854 = vst [vmem:[%s2 + $0x610] sm:$0xff] %v1342
    %1855 = vst [vmem:[%s2 + $0x618] sm:$0xff] %v1343
    %1856 = vst [vmem:[%s2 + $0x620] sm:$0xff] %v1344
    %1857 = vst [vmem:[%s2 + $0x628] sm:$0xff] %v1345
    %1858 = vst [vmem:[%s2 + $0x630] sm:$0xff] %v1346
    %1859 = vst [vmem:[%s2 + $0x638] sm:$0xff] %v1347
    %1860 = vst [vmem:[%s2 + $0x640] sm:$0xff] %v1348
    %1861 = vst [vmem:[%s2 + $0x648] sm:$0xff] %v1349
    %1862 = vst [vmem:[%s2 + $0x650] sm:$0xff] %v1350
    %1863 = vst [vmem:[%s2 + $0x658] sm:$0xff] %v1351
    %1864 = vst [vmem:[%s2 + $0x660] sm:$0xff] %v1352
    %1865 = vst [vmem:[%s2 + $0x668] sm:$0xff] %v1353
    %1866 = vst [vmem:[%s2 + $0x670] sm:$0xff] %v1354
    %1867 = vst [vmem:[%s2 + $0x678] sm:$0xff] %v1355
    %1868 = vst [vmem:[%s2 + $0x680] sm:$0xff] %v1356
    %1869 = vst [vmem:[%s2 + $0x688] sm:$0xff] %v1357
    %1870 = vst [vmem:[%s2 + $0x690] sm:$0xff] %v1358
    %1871 = vst [vmem:[%s2 + $0x698] sm:$0xff] %v1359
    %1872 = vst [vmem:[%s2 + $0x6a0] sm:$0xff] %v1360
    %1873 = vst [vmem:[%s2 + $0x6a8] sm:$0xff] %v1361
    %1874 = vst [vmem:[%s2 + $0x6b0] sm:$0xff] %v1362
    %1875 = vst [vmem:[%s2 + $0x6b8] sm:$0xff] %v1363
    %1876 = vst [vmem:[%s2 + $0x6c0] sm:$0xff] %v1364
    %1877 = vst [vmem:[%s2 + $0x6c8] sm:$0xff] %v1365
    %1878 = vst [vmem:[%s2 + $0x6d0] sm:$0xff] %v1366
    %1879 = vst [vmem:[%s2 + $0x6d8] sm:$0xff] %v1367
    %1880 = vst [vmem:[%s2 + $0x6e0] sm:$0xff] %v1368
    %1881 = vst [vmem:[%s2 + $0x6e8] sm:$0xff] %v1369
    %1882 = vst [vmem:[%s2 + $0x6f0] sm:$0xff] %v1370
    %1883 = vst [vmem:[%s2 + $0x6f8] sm:$0xff] %v1371
    %1884 = vst [vmem:[%s2 + $0x700] sm:$0xff] %v1372
    %1885 = vst [vmem:[%s2 + $0x708] sm:$0xff] %v1373
    %1886 = vst [vmem:[%s2 + $0x710] sm:$0xff] %v1374
    %1887 = vst [vmem:[%s2 + $0x718] sm:$0xff] %v1375
    %1888 = vst [vmem:[%s2 + $0x720] sm:$0xff] %v1376
    %1889 = vst [vmem:[%s2 + $0x728] sm:$0xff] %v1377
    %1890 = vst [vmem:[%s2 + $0x730] sm:$0xff] %v1378
    %1891 = vst [vmem:[%s2 + $0x738] sm:$0xff] %v1379
    %1892 = vst [vmem:[%s2 + $0x740] sm:$0xff] %v1380
    %1893 = vst [vmem:[%s2 + $0x748] sm:$0xff] %v1381
    %1894 = vst [vmem:[%s2 + $0x750] sm:$0xff] %v1382
    %1895 = vst [vmem:[%s2 + $0x758] sm:$0xff] %v1383
    %1896 = vst [vmem:[%s2 + $0x760] sm:$0xff] %v1384
    %1897 = vst [vmem:[%s2 + $0x768] sm:$0xff] %v1385
    %1898 = vst [vmem:[%s2 + $0x770] sm:$0xff] %v1386
    %1899 = vst [vmem:[%s2 + $0x778] sm:$0xff] %v1387
    %1900 = vst [vmem:[%s2 + $0x780] sm:$0xff] %v1388
    %1901 = vst [vmem:[%s2 + $0x788] sm:$0xff] %v1389
    %1902 = vst [vmem:[%s2 + $0x790] sm:$0xff] %v1390
    %1903 = vst [vmem:[%s2 + $0x798] sm:$0xff] %v1391
    %1904 = vst [vmem:[%s2 + $0x7a0] sm:$0xff] %v1392
    %1905 = vst [vmem:[%s2 + $0x7a8] sm:$0xff] %v1393
    %1906 = vst [vmem:[%s2 + $0x7b0] sm:$0xff] %v1394
    %1907 = vst [vmem:[%s2 + $0x7b8] sm:$0xff] %v1395
    %1908 = vst [vmem:[%s2 + $0x7c0] sm:$0xff] %v1396
    %1909 = vst [vmem:[%s2 + $0x7c8] sm:$0xff] %v1397
    %1910 = vst [vmem:[%s2 + $0x7d0] sm:$0xff] %v1398
    %1911 = vst [vmem:[%s2 + $0x7d8] sm:$0xff] %v1399
    %1912 = vst [vmem:[%s2 + $0x7e0] sm:$0xff] %v1400
    %1913 = vst [vmem:[%s2 + $0x7e8] sm:$0xff] %v1401
    %1914 = vst [vmem:[%s2 + $0x7f0] sm:$0xff] %v1402
    %1915 = vst [vmem:[%s2 + $0x7f8] sm:$0xff] %v1403
    %1916 = vst [vmem:[%s2 + $0x800] sm:$0xff] %v1404
    %1917 = vst [vmem:[%s2 + $0x808] sm:$0xff] %v1405
    %1918 = vst [vmem:[%s2 + $0x810] sm:$0xff] %v1406
    %1919 = vst [vmem:[%s2 + $0x818] sm:$0xff] %v1407
    %1920 = vst [vmem:[%s2 + $0x820] sm:$0xff] %v1408
    %1921 = vst [vmem:[%s2 + $0x828] sm:$0xff] %v1409
    %1922 = vst [vmem:[%s2 + $0x830] sm:$0xff] %v1410
    %1923 = vst [vmem:[%s2 + $0x838] sm:$0xff] %v1411
    %1924 = vst [vmem:[%s2 + $0x840] sm:$0xff] %v1412
    %1925 = vst [vmem:[%s2 + $0x848] sm:$0xff] %v1413
    %1926 = vst [vmem:[%s2 + $0x850] sm:$0xff] %v1414
    %1927 = vst [vmem:[%s2 + $0x858] sm:$0xff] %v1415
    %1928 = vst [vmem:[%s2 + $0x860] sm:$0xff] %v1416
    %1929 = vst [vmem:[%s2 + $0x868] sm:$0xff] %v1417
    %1930 = vst [vmem:[%s2 + $0x870] sm:$0xff] %v1418
    %1931 = vst [vmem:[%s2 + $0x878] sm:$0xff] %v1419
    %1932 = vst [vmem:[%s2 + $0x880] sm:$0xff] %v1420
    %1933 = vst [vmem:[%s2 + $0x888] sm:$0xff] %v1421
    %1934 = vst [vmem:[%s2 + $0x890] sm:$0xff] %v1422
    %1935 = vst [vmem:[%s2 + $0x898] sm:$0xff] %v1423
    %1936 = vst [vmem:[%s2 + $0x8a0] sm:$0xff] %v1424
    %1937 = vst [vmem:[%s2 + $0x8a8] sm:$0xff] %v1425
    %1938 = vst [vmem:[%s2 + $0x8b0] sm:$0xff] %v1426
    %1939 = vst [vmem:[%s2 + $0x8b8] sm:$0xff] %v1427
    %1940 = vst [vmem:[%s2 + $0x8c0] sm:$0xff] %v1428
    %1941 = vst [vmem:[%s2 + $0x8c8] sm:$0xff] %v1429
    %1942 = vst [vmem:[%s2 + $0x8d0] sm:$0xff] %v1430
    %1943 = vst [vmem:[%s2 + $0x8d8] sm:$0xff] %v1431
    %1944 = vst [vmem:[%s2 + $0x8e0] sm:$0xff] %v1432
    %1945 = vst [vmem:[%s2 + $0x8e8] sm:$0xff] %v1433
    %1946 = vst [vmem:[%s2 + $0x8f0] sm:$0xff] %v1434
    %1947 = vst [vmem:[%s2 + $0x8f8] sm:$0xff] %v1435
    %1948 = vst [vmem:[%s2 + $0x900] sm:$0xff] %v1436
    %1949 = vst [vmem:[%s2 + $0x908] sm:$0xff] %v1437
    %1950 = vst [vmem:[%s2 + $0x910] sm:$0xff] %v1438
    %1951 = vst [vmem:[%s2 + $0x918] sm:$0xff] %v1439
    %1952 = vst [vmem:[%s2 + $0x920] sm:$0xff] %v1440
    %1953 = vst [vmem:[%s2 + $0x928] sm:$0xff] %v1441
    %1954 = vst [vmem:[%s2 + $0x930] sm:$0xff] %v1442
    %1955 = vst [vmem:[%s2 + $0x938] sm:$0xff] %v1443
    %1956 = vst [vmem:[%s2 + $0x940] sm:$0xff] %v1444
    %1957 = vst [vmem:[%s2 + $0x948] sm:$0xff] %v1445
    %1958 = vst [vmem:[%s2 + $0x950] sm:$0xff] %v1446
    %1959 = vst [vmem:[%s2 + $0x958] sm:$0xff] %v1447
    %1960 = vst [vmem:[%s2 + $0x960] sm:$0xff] %v1448
    %1961 = vst [vmem:[%s2 + $0x968] sm:$0xff] %v1449
    %1962 = vst [vmem:[%s2 + $0x970] sm:$0xff] %v1450
    %1963 = vst [vmem:[%s2 + $0x978] sm:$0xff] %v1451
    %1964 = vst [vmem:[%s2 + $0x980] sm:$0xff] %v1452
    %1965 = vst [vmem:[%s2 + $0x988] sm:$0xff] %v1453
    %1966 = vst [vmem:[%s2 + $0x990] sm:$0xff] %v1454
    %1967 = vst [vmem:[%s2 + $0x998] sm:$0xff] %v1455
    %1968 = vst [vmem:[%s2 + $0x9a0] sm:$0xff] %v1456
    %1969 = vst [vmem:[%s2 + $0x9a8] sm:$0xff] %v1457
    %1970 = vst [vmem:[%s2 + $0x9b0] sm:$0xff] %v1458
    %1971 = vst [vmem:[%s2 + $0x9b8] sm:$0xff] %v1459
    %1972 = vst [vmem:[%s2 + $0x9c0] sm:$0xff] %v1460
    %1973 = vst [vmem:[%s2 + $0x9c8] sm:$0xff] %v1461
    %1974 = vst [vmem:[%s2 + $0x9d0] sm:$0xff] %v1462
    %1975 = vst [vmem:[%s2 + $0x9d8] sm:$0xff] %v1463
    %1976 = vst [vmem:[%s2 + $0x9e0] sm:$0xff] %v1464
    %1977 = vst [vmem:[%s2 + $0x9e8] sm:$0xff] %v1465
    %1978 = vst [vmem:[%s2 + $0x9f0] sm:$0xff] %v1466
    %1979 = vst [vmem:[%s2 + $0x9f8] sm:$0xff] %v1467
    %1980 = vst [vmem:[%s2 + $0xa00] sm:$0xff] %v1468
    %1981 = vst [vmem:[%s2 + $0xa08] sm:$0xff] %v1469
    %1982 = vst [vmem:[%s2 + $0xa10] sm:$0xff] %v1470
    %1983 = vst [vmem:[%s2 + $0xa18] sm:$0xff] %v1471
    %1984 = vst [vmem:[%s2 + $0xa20] sm:$0xff] %v1472
    %1985 = vst [vmem:[%s2 + $0xa28] sm:$0xff] %v1473
    %1986 = vst [vmem:[%s2 + $0xa30] sm:$0xff] %v1474
    %1987 = vst [vmem:[%s2 + $0xa38] sm:$0xff] %v1475
    %1988 = vst [vmem:[%s2 + $0xa40] sm:$0xff] %v1476
    %1989 = vst [vmem:[%s2 + $0xa48] sm:$0xff] %v1477
    %1990 = vst [vmem:[%s2 + $0xa50] sm:$0xff] %v1478
    %1991 = vst [vmem:[%s2 + $0xa58] sm:$0xff] %v1479
    %1992 = vst [vmem:[%s2 + $0xa60] sm:$0xff] %v1480
    %1993 = vst [vmem:[%s2 + $0xa68] sm:$0xff] %v1481
    %1994 = vst [vmem:[%s2 + $0xa70] sm:$0xff] %v1482
    %1995 = vst [vmem:[%s2 + $0xa78] sm:$0xff] %v1483
    %1996 = vst [vmem:[%s2 + $0xa80] sm:$0xff] %v1484
    %1997 = vst [vmem:[%s2 + $0xa88] sm:$0xff] %v1485
    %1998 = vst [vmem:[%s2 + $0xa90] sm:$0xff] %v1486
    %1999 = vst [vmem:[%s2 + $0xa98] sm:$0xff] %v1487
    %2000 = vst [vmem:[%s2 + $0xaa0] sm:$0xff] %v1488
    %2001 = vst [vmem:[%s2 + $0xaa8] sm:$0xff] %v1489
    %2002 = vst [vmem:[%s2 + $0xab0] sm:$0xff] %v1490
    %2003 = vst [vmem:[%s2 + $0xab8] sm:$0xff] %v1491
    %2004 = vst [vmem:[%s2 + $0xac0] sm:$0xff] %v1492
    %2005 = vst [vmem:[%s2 + $0xac8] sm:$0xff] %v1493
    %2006 = vst [vmem:[%s2 + $0xad0] sm:$0xff] %v1494
    %2007 = vst [vmem:[%s2 + $0xad8] sm:$0xff] %v1495
    %2008 = vst [vmem:[%s2 + $0xae0] sm:$0xff] %v1496
    %2009 = vst [vmem:[%s2 + $0xae8] sm:$0xff] %v1497
    %2010 = vst [vmem:[%s2 + $0xaf0] sm:$0xff] %v1498
    %2011 = vst [vmem:[%s2 + $0xaf8] sm:$0xff] %v1499
    %2012 = vst [vmem:[%s2 + $0xb00] sm:$0xff] %v1500
    %2013 = vst [vmem:[%s2 + $0xb08] sm:$0xff] %v1501
    %2014 = vst [vmem:[%s2 + $0xb10] sm:$0xff] %v1502
    %2015 = vst [vmem:[%s2 + $0xb18] sm:$0xff] %v1503
    %2016 = vst [vmem:[%s2 + $0xb20] sm:$0xff] %v1504
    %2017 = vst [vmem:[%s2 + $0xb28] sm:$0xff] %v1505
    %2018 = vst [vmem:[%s2 + $0xb30] sm:$0xff] %v1506
    %2019 = vst [vmem:[%s2 + $0xb38] sm:$0xff] %v1507
    %2020 = vst [vmem:[%s2 + $0xb40] sm:$0xff] %v1508
    %2021 = vst [vmem:[%s2 + $0xb48] sm:$0xff] %v1509
    %2022 = vst [vmem:[%s2 + $0xb50] sm:$0xff] %v1510
    %2023 = vst [vmem:[%s2 + $0xb58] sm:$0xff] %v1511
    %2024 = vst [vmem:[%s2 + $0xb60] sm:$0xff] %v1512
    %2025 = vst [vmem:[%s2 + $0xb68] sm:$0xff] %v1513
    %2026 = vst [vmem:[%s2 + $0xb70] sm:$0xff] %v1514
    %2027 = vst [vmem:[%s2 + $0xb78] sm:$0xff] %v1515
    %2028 = vst [vmem:[%s2 + $0xb80] sm:$0xff] %v1516
    %2029 = vst [vmem:[%s2 + $0xb88] sm:$0xff] %v1517
    %2030 = vst [vmem:[%s2 + $0xb90] sm:$0xff] %v1518
    %2031 = vst [vmem:[%s2 + $0xb98] sm:$0xff] %v1519
    %2032 = vst [vmem:[%s2 + $0xba0] sm:$0xff] %v1520
    %2033 = vst [vmem:[%s2 + $0xba8] sm:$0xff] %v1521
    %2034 = vst [vmem:[%s2 + $0xbb0] sm:$0xff] %v1522
    %2035 = vst [vmem:[%s2 + $0xbb8] sm:$0xff] %v1523
    %2036 = vst [vmem:[%s2 + $0xbc0] sm:$0xff] %v1524
    %2037 = vst [vmem:[%s2 + $0xbc8] sm:$0xff] %v1525
    %2038 = vst [vmem:[%s2 + $0xbd0] sm:$0xff] %v1526
    %2039 = vst [vmem:[%s2 + $0xbd8] sm:$0xff] %v1527
    %2040 = vst [vmem:[%s2 + $0xbe0] sm:$0xff] %v1528
    %2041 = vst [vmem:[%s2 + $0xbe8] sm:$0xff] %v1529
    %2042 = vst [vmem:[%s2 + $0xbf0] sm:$0xff] %v1530
    %2043 = vst [vmem:[%s2 + $0xbf8] sm:$0xff] %v1531
    %2044 = vst [vmem:[%s2 + $0xc00] sm:$0xff] %v1532
    %2045 = vst [vmem:[%s2 + $0xc08] sm:$0xff] %v1533
    %2046 = vst [vmem:[%s2 + $0xc10] sm:$0xff] %v1534
    %2047 = vst [vmem:[%s2 + $0xc18] sm:$0xff] %v1535
    %2048 = vst [vmem:[%s2 + $0xc20] sm:$0xff] %v1536
    %2049 = vst [vmem:[%s2 + $0xc28] sm:$0xff] %v1537
    %2050 = vst [vmem:[%s2 + $0xc30] sm:$0xff] %v1538
    %2051 = vst [vmem:[%s2 + $0xc38] sm:$0xff] %v1539
    %2052 = vst [vmem:[%s2 + $0xc40] sm:$0xff] %v1540
    %2053 = vst [vmem:[%s2 + $0xc48] sm:$0xff] %v1541
    %2054 = vst [vmem:[%s2 + $0xc50] sm:$0xff] %v1542
    %2055 = vst [vmem:[%s2 + $0xc58] sm:$0xff] %v1543
    %2056 = vst [vmem:[%s2 + $0xc60] sm:$0xff] %v1544
    %2057 = vst [vmem:[%s2 + $0xc68] sm:$0xff] %v1545
    %2058 = vst [vmem:[%s2 + $0xc70] sm:$0xff] %v1546
    %2059 = vst [vmem:[%s2 + $0xc78] sm:$0xff] %v1547
    %2060 = vst [vmem:[%s2 + $0xc80] sm:$0xff] %v1548
    %2061 = vst [vmem:[%s2 + $0xc88] sm:$0xff] %v1549
    %2062 = vst [vmem:[%s2 + $0xc90] sm:$0xff] %v1550
    %2063 = vst [vmem:[%s2 + $0xc98] sm:$0xff] %v1551
    %2064 = vst [vmem:[%s2 + $0xca0] sm:$0xff] %v1552
    %2065 = vst [vmem:[%s2 + $0xca8] sm:$0xff] %v1553
    %2066 = vst [vmem:[%s2 + $0xcb0] sm:$0xff] %v1554
    %2067 = vst [vmem:[%s2 + $0xcb8] sm:$0xff] %v1555
    %2068 = vst [vmem:[%s2 + $0xcc0] sm:$0xff] %v1556
    %2069 = vst [vmem:[%s2 + $0xcc8] sm:$0xff] %v1557
    %2070 = vst [vmem:[%s2 + $0xcd0] sm:$0xff] %v1558
    %2071 = vst [vmem:[%s2 + $0xcd8] sm:$0xff] %v1559
    %2072 = vst [vmem:[%s2 + $0xce0] sm:$0xff] %v1560
    %2073 = vst [vmem:[%s2 + $0xce8] sm:$0xff] %v1561
    %2074 = vst [vmem:[%s2 + $0xcf0] sm:$0xff] %v1562
    %2075 = vst [vmem:[%s2 + $0xcf8] sm:$0xff] %v1563
    %2076 = vst [vmem:[%s2 + $0xd00] sm:$0xff] %v1564
    %2077 = vst [vmem:[%s2 + $0xd08] sm:$0xff] %v1565
    %2078 = vst [vmem:[%s2 + $0xd10] sm:$0xff] %v1566
    %2079 = vst [vmem:[%s2 + $0xd18] sm:$0xff] %v1567
    %2080 = vst [vmem:[%s2 + $0xd20] sm:$0xff] %v1568
    %2081 = vst [vmem:[%s2 + $0xd28] sm:$0xff] %v1569
    %2082 = vst [vmem:[%s2 + $0xd30] sm:$0xff] %v1570
    %2083 = vst [vmem:[%s2 + $0xd38] sm:$0xff] %v1571
    %2084 = vst [vmem:[%s2 + $0xd40] sm:$0xff] %v1572
    %2085 = vst [vmem:[%s2 + $0xd48] sm:$0xff] %v1573
    %2086 = vst [vmem:[%s2 + $0xd50] sm:$0xff] %v1574
    %2087 = vst [vmem:[%s2 + $0xd58] sm:$0xff] %v1575
    %2088 = vst [vmem:[%s2 + $0xd60] sm:$0xff] %v1576
    %2089 = vst [vmem:[%s2 + $0xd68] sm:$0xff] %v1577
    %2090 = vst [vmem:[%s2 + $0xd70] sm:$0xff] %v1578
    %2091 = vst [vmem:[%s2 + $0xd78] sm:$0xff] %v1579
    %2092 = vst [vmem:[%s2 + $0xd80] sm:$0xff] %v1580
    %2093 = vst [vmem:[%s2 + $0xd88] sm:$0xff] %v1581
    %2094 = vst [vmem:[%s2 + $0xd90] sm:$0xff] %v1582
    %2095 = vst [vmem:[%s2 + $0xd98] sm:$0xff] %v1583
    %2096 = vst [vmem:[%s2 + $0xda0] sm:$0xff] %v1584
    %2097 = vst [vmem:[%s2 + $0xda8] sm:$0xff] %v1585
    %2098 = vst [vmem:[%s2 + $0xdb0] sm:$0xff] %v1586
    %2099 = vst [vmem:[%s2 + $0xdb8] sm:$0xff] %v1587
    %2100 = vst [vmem:[%s2 + $0xdc0] sm:$0xff] %v1588
    %2101 = vst [vmem:[%s2 + $0xdc8] sm:$0xff] %v1589
    %2102 = vst [vmem:[%s2 + $0xdd0] sm:$0xff] %v1590
    %2103 = vst [vmem:[%s2 + $0xdd8] sm:$0xff] %v1591
    %2104 = vst [vmem:[%s2 + $0xde0] sm:$0xff] %v1592
    %2105 = vst [vmem:[%s2 + $0xde8] sm:$0xff] %v1593
    %2106 = vst [vmem:[%s2 + $0xdf0] sm:$0xff] %v1594
    %2107 = vst [vmem:[%s2 + $0xdf8] sm:$0xff] %v1595
    %2108 = vst [vmem:[%s2 + $0xe00] sm:$0xff] %v1596
    %2109 = vst [vmem:[%s2 + $0xe08] sm:$0xff] %v1597
    %2110 = vst [vmem:[%s2 + $0xe10] sm:$0xff] %v1598
    %2111 = vst [vmem:[%s2 + $0xe18] sm:$0xff] %v1599
    %2112 = vst [vmem:[%s2 + $0xe20] sm:$0xff] %v1600
    %2113 = vst [vmem:[%s2 + $0xe28] sm:$0xff] %v1601
    %2114 = vst [vmem:[%s2 + $0xe30] sm:$0xff] %v1602
    %2115 = vst [vmem:[%s2 + $0xe38] sm:$0xff] %v1603
    %2116 = vst [vmem:[%s2 + $0xe40] sm:$0xff] %v1604
    %2117 = vst [vmem:[%s2 + $0xe48] sm:$0xff] %v1605
    %2118 = vst [vmem:[%s2 + $0xe50] sm:$0xff] %v1606
    %2119 = vst [vmem:[%s2 + $0xe58] sm:$0xff] %v1607
    %2120 = vst [vmem:[%s2 + $0xe60] sm:$0xff] %v1608
    %2121 = vst [vmem:[%s2 + $0xe68] sm:$0xff] %v1609
    %2122 = vst [vmem:[%s2 + $0xe70] sm:$0xff] %v1610
    %2123 = vst [vmem:[%s2 + $0xe78] sm:$0xff] %v1611
    %2124 = vst [vmem:[%s2 + $0xe80] sm:$0xff] %v1612
    %2125 = vst [vmem:[%s2 + $0xe88] sm:$0xff] %v1613
    %2126 = vst [vmem:[%s2 + $0xe90] sm:$0xff] %v1614
    %2127 = vst [vmem:[%s2 + $0xe98] sm:$0xff] %v1615
    %2128 = vst [vmem:[%s2 + $0xea0] sm:$0xff] %v1616
    %2129 = vst [vmem:[%s2 + $0xea8] sm:$0xff] %v1617
    %2130 = vst [vmem:[%s2 + $0xeb0] sm:$0xff] %v1618
    %2131 = vst [vmem:[%s2 + $0xeb8] sm:$0xff] %v1619
    %2132 = vst [vmem:[%s2 + $0xec0] sm:$0xff] %v1620
    %2133 = vst [vmem:[%s2 + $0xec8] sm:$0xff] %v1621
    %2134 = vst [vmem:[%s2 + $0xed0] sm:$0xff] %v1622
    %2135 = vst [vmem:[%s2 + $0xed8] sm:$0xff] %v1623
    %2136 = vst [vmem:[%s2 + $0xee0] sm:$0xff] %v1624
    %2137 = vst [vmem:[%s2 + $0xee8] sm:$0xff] %v1625
    %2138 = vst [vmem:[%s2 + $0xef0] sm:$0xff] %v1626
    %2139 = vst [vmem:[%s2 + $0xef8] sm:$0xff] %v1627
    %2140 = vst [vmem:[%s2 + $0xf00] sm:$0xff] %v1628
    %2141 = vst [vmem:[%s2 + $0xf08] sm:$0xff] %v1629
    %2142 = vst [vmem:[%s2 + $0xf10] sm:$0xff] %v1630
    %2143 = vst [vmem:[%s2 + $0xf18] sm:$0xff] %v1631
    %2144 = vst [vmem:[%s2 + $0xf20] sm:$0xff] %v1632
    %2145 = vst [vmem:[%s2 + $0xf28] sm:$0xff] %v1633
    %2146 = vst [vmem:[%s2 + $0xf30] sm:$0xff] %v1634
    %2147 = vst [vmem:[%s2 + $0xf38] sm:$0xff] %v1635
    %2148 = vst [vmem:[%s2 + $0xf40] sm:$0xff] %v1636
    %2149 = vst [vmem:[%s2 + $0xf48] sm:$0xff] %v1637
    %2150 = vst [vmem:[%s2 + $0xf50] sm:$0xff] %v1638
    %2151 = vst [vmem:[%s2 + $0xf58] sm:$0xff] %v1639
    %2152 = vst [vmem:[%s2 + $0xf60] sm:$0xff] %v1640
    %2153 = vst [vmem:[%s2 + $0xf68] sm:$0xff] %v1641
    %2154 = vst [vmem:[%s2 + $0xf70] sm:$0xff] %v1642
    %2155 = vst [vmem:[%s2 + $0xf78] sm:$0xff] %v1643
    %2156 = vst [vmem:[%s2 + $0xf80] sm:$0xff] %v1644
    %2157 = vst [vmem:[%s2 + $0xf88] sm:$0xff] %v1645
    %2158 = vst [vmem:[%s2 + $0xf90] sm:$0xff] %v1646
    %2159 = vst [vmem:[%s2 + $0xf98] sm:$0xff] %v1647
    %2160 = vst [vmem:[%s2 + $0xfa0] sm:$0xff] %v1648
    %2161 = vst [vmem:[%s2 + $0xfa8] sm:$0xff] %v1649
    %2162 = vst [vmem:[%s2 + $0xfb0] sm:$0xff] %v1650
    %2163 = vst [vmem:[%s2 + $0xfb8] sm:$0xff] %v1651
    %2164 = vst [vmem:[%s2 + $0xfc0] sm:$0xff] %v1652
    %2165 = vst [vmem:[%s2 + $0xfc8] sm:$0xff] %v1653
    %2166 = vst [vmem:[%s2 + $0xfd0] sm:$0xff] %v1654
    %2167 = vst [vmem:[%s2 + $0xfd8] sm:$0xff] %v1655
    %2168 = vst [vmem:[%s2 + $0xfe0] sm:$0xff] %v1656
    %2169 = vst [vmem:[%s2 + $0xfe8] sm:$0xff] %v1657
    %2170 = vst [vmem:[%s2 + $0xff0] sm:$0xff] %v1658
    %2171 = vst [vmem:[%s2 + $0xff8] sm:$0xff] %v1659
    // Predicated region
    $region14: #{eca_forward.1} parent=1 // pred_check
      _
    $region15: #{eca_forward.1} parent=1 // pred_check_branch
      %2173 = sbr.rel (0) target = $region17
    $region16: #{eca_forward.1} parent=1 // pred_region
      _
    $region17: #{eca_forward.1} parent=1 // pred_fallthru
      _
    // Predicated region
    $region18: #{eca_forward.1} parent=1 // pred_check
      _
    $region19: #{eca_forward.1} parent=1 // pred_check_branch
      %2175 = sbr.rel (0) target = $region21
    $region20: #{eca_forward.1} parent=1 // pred_region
      _
    $region21: #{eca_forward.1} parent=1 // pred_fallthru
      _
    %2176 = vsyncpa [#allocation3], 1

</llo_original>
